<compile_context>
chip_gen: v7x
topology: tpu7x:2x2x1
jax: 0.10.0
libtpu: 0.0.40
codegen_flags: <defaults>
</compile_context>

<pallas_src>
import numpy as np
import jax
import jax.numpy as jnp
from jax import lax
from jax.experimental import pallas as pl
from jax.experimental.pallas import tpu as pltpu


# ------------------------------ tile sizing -----------------------------------
def _pick_tile(si, sjk):
    """Points per grid step, sized so per-point intermediates fit scoped VMEM."""
    budget = 12 * 1024 * 1024            # bytes for (Sjk,TN) bf16 one-hot + (Si,TN) f32 rows
    per_pt = sjk * 2 + si * 4 + 64       # + small (1,TN) index rows
    tn = (budget // per_pt) // 128 * 128
    return int(max(256, min(2048, tn)))


# ------------------------------- Pallas kernel --------------------------------
def _make_maskgrid_kernel(si, sj, sk, scale, shift):
    sx, sy, sz = float(scale[0]), float(scale[1]), float(scale[2])
    tx, ty, tz = float(shift[0]), float(shift[1]), float(shift[2])
    sjk = sj * sk

    def kernel(xyz_ref, mask_ref, out_ref):
        # xyz_ref : (3, TN)     f32   query points, points along lanes
        # mask_ref: (Si, Sj*Sk) bf16  occupancy grid (1.0 = occupied), resident
        # out_ref : (1, TN)     f32   1.0 where occupied & in-bounds, else 0.0
        x = xyz_ref[0:1, :]
        y = xyz_ref[1:2, :]
        z = xyz_ref[2:3, :]

        # nearest voxel: round(v) via floor(v + 0.5), same op order as reference.
        # TODO(synk): CUDA round() rounds halves away from zero; floor(v+0.5)
        # differs only at exact negative .5 ties (measure-zero for real data).
        i = jnp.floor(x * sx + tx + 0.5).astype(jnp.int32)        # (1, TN)
        j = jnp.floor(y * sy + ty + 0.5).astype(jnp.int32)
        k = jnp.floor(z * sz + tz + 0.5).astype(jnp.int32)

        in_bounds = ((i >= 0) & (i < si) &
                     (j >= 0) & (j < sj) &
                     (k >= 0) & (k < sk))                         # (1, TN)

        # No clipping: an out-of-range jk yields an all-zero one-hot column;
        # jk values that alias back into range are zeroed by in_bounds below.
        jk = j * sk + k                                           # (1, TN)

        # Stage A: the big Sj*Sk axis feeds the MXU. bf16 one-hot (Sjk, TN)
        # contracted against the bf16 mask (Si, Sjk) -> (Si, TN) f32.
        jk_iota = lax.broadcasted_iota(jnp.int32, (sjk, 1), 0)    # (Sjk, 1)
        onehot_jk = (jk_iota == jk).astype(jnp.bfloat16)          # (Sjk, TN)
        rows = jnp.dot(mask_ref[...], onehot_jk,
                       preferred_element_type=jnp.float32)        # (Si, TN)

        # Stage B: pick row i over the tiny Si axis — f32 VPU select + sublane
        # reduce (cheap: Si rows only).
        i_iota = lax.broadcasted_iota(jnp.int32, (si, 1), 0)      # (Si, 1)
        picked = jnp.where(i_iota == i, rows, 0.0)                # (Si, TN)
        val = jnp.sum(picked, axis=0, keepdims=True)              # (1, TN)

        out_ref[...] = jnp.where(in_bounds, val, 0.0)

    return kernel


# ------------------------------- host wrapper ----------------------------------
def maskgrid_forward(xyz, mask, xyz_min, xyz_max):
    """MaskGrid.forward: boolean occupancy lookup for xyz[..., 3]."""
    shape = xyz.shape[:-1]
    si, sj, sk = (int(s) for s in mask.shape)
    sjk = sj * sk
    # TODO(synk): very large grids (Sj*Sk in the tens of thousands) would need
    # a jk tiling axis (chunked one-hot + running accumulate in scratch) to cap
    # the (Sjk, TN) intermediate; not required at these sizes.

    xyz_min = np.asarray(xyz_min, np.float32)
    xyz_max = np.asarray(xyz_max, np.float32)
    sizes = np.array([si, sj, sk], np.float32)
    scale = (sizes - 1.0) / (xyz_max - xyz_min)          # buffer 'xyz2ijk_scale'
    shift = -xyz_min * scale                             # buffer 'xyz2ijk_shift'

    tn = _pick_tile(si, sjk)

    pts = xyz.reshape(-1, 3).astype(jnp.float32)
    n = pts.shape[0]
    num_tiles = int(pl.cdiv(n, tn))
    n_pad = num_tiles * tn
    if n_pad != n:
        pts = jnp.pad(pts, ((0, n_pad - n), (0, 0)))
    pts_t = pts.T                                        # (3, n_pad): points along lanes

    mask2d = jnp.asarray(mask, jnp.bfloat16).reshape(si, sjk)    # (Si, Sj*Sk)

    # VMEM budget: resident mask (x2 pipeline buffers), double-buffered xyz/out
    # blocks, plus the in-kernel (Sjk,TN) one-hot and (Si,TN) rows.  Keep the
    # explicit limit under v7x's 64 MiB physical VMEM.
    working = (2 * si * sjk * 2 + 2 * 3 * tn * 4 + 2 * tn * 4
               + sjk * tn * 2 + sjk * tn + si * tn * 4)
    vmem_limit = int(min(max(32 * 1024 * 1024, 2 * working), 60 * 1024 * 1024))

    flops = n_pad * (2 * si * sjk + 2 * sjk + 8 * si)
    bytes_accessed = 3 * n_pad * 4 + n_pad * 4 + si * sjk * 2    # mask counted once

    out = pl.pallas_call(
        _make_maskgrid_kernel(si, sj, sk, scale, shift),
        out_shape=jax.ShapeDtypeStruct((1, n_pad), jnp.float32),
        grid=(num_tiles,),
        in_specs=[
            pl.BlockSpec((3, tn), lambda t: (0, t)),      # point block (lane-major)
            pl.BlockSpec((si, sjk), lambda t: (0, 0)),    # whole occupancy grid, resident
        ],
        out_specs=pl.BlockSpec((1, tn), lambda t: (0, t)),
        compiler_params=pltpu.CompilerParams(
            dimension_semantics=("parallel",),
            vmem_limit_bytes=vmem_limit),
        cost_estimate=pl.CostEstimate(flops=flops, transcendentals=0,
                                      bytes_accessed=bytes_accessed),
    )(pts_t, mask2d)

    # TODO(synk): an int8/bool kernel output would drop this host-side pass;
    # kept f32 in the kernel for robust lane-dense stores on all generations.
    out = out[0, :n] > 0.5
    return out.reshape(shape)


# ------------------------------ numpy reference --------------------------------
def reference_forward(xyz_np, mask_np, xyz_min, xyz_max):
    shape = xyz_np.shape[:-1]
    pts = xyz_np.reshape(-1, 3).astype(np.float32)
    xyz_min = np.asarray(xyz_min, np.float32)
    xyz_max = np.asarray(xyz_max, np.float32)
    sizes = np.array(mask_np.shape, np.float32)
    scale = (sizes - 1.0) / (xyz_max - xyz_min)
    shift = -xyz_min * scale
    ijk = np.floor(pts * scale[None, :] + shift[None, :] + np.float32(0.5)).astype(np.int64)
    dims = np.array(mask_np.shape, np.int64)
    in_bounds = np.all((ijk >= 0) & (ijk < dims[None, :]), axis=-1)
    ijk_c = np.clip(ijk, 0, dims[None, :] - 1)
    vals = mask_np[ijk_c[:, 0], ijk_c[:, 1], ijk_c[:, 2]]
    out = np.where(in_bounds, vals, False)
    return out.reshape(shape)


# ----------------------------------- main ---------------------------------------
if __name__ == "__main__":
    key = jax.random.PRNGKey(0)
    k_mask, k_xyz = jax.random.split(key)

    GRID_SHAPE = (16, 16, 16)
    XYZ_MIN = np.array([-1.0, -1.0, -1.0], np.float32)
    XYZ_MAX = np.array([1.0, 1.0, 1.0], np.float32)

    # deterministic occupancy grid + query points (some outside the bbox so the
    # out-of-bounds -> False path is exercised; enough points for several tiles)
    mask = jax.random.bernoulli(k_mask, 0.4, GRID_SHAPE)
    xyz = jax.random.uniform(k_xyz, (2, 5000, 3), jnp.float32,
                             minval=-1.2, maxval=1.2)

    out = maskgrid_forward(xyz, mask, XYZ_MIN, XYZ_MAX)
    out = jax.block_until_ready(out)
    assert out.shape == (2, 5000)
    assert out.dtype == jnp.bool_

    ref = reference_forward(np.asarray(xyz), np.asarray(mask), XYZ_MIN, XYZ_MAX)
    assert np.array_equal(np.asarray(out), ref), "mismatch vs reference"

    print("KERNEL_OK")
</pallas_src>

<mosaic_0001>
module attributes {stable_mosaic.version = 11 : i64} {
  func.func @kernel(%arg0: i32, %arg1: memref<3x2048xf32, #tpu.memory_space<vmem>>, %arg2: memref<16x256xbf16, #tpu.memory_space<vmem>>, %arg3: memref<1x2048xf32, #tpu.memory_space<vmem>>) attributes {dimension_semantics = [#tpu.dimension_semantics<parallel>], iteration_bounds = array<i64: 5>, scalar_prefetch = 0 : i64, scratch_operands = 0 : i64, tpu.core_type = #tpu.core_type<tc>, window_params = [{transform_indices = @transform_0, window_bounds = array<i64: 3, 2048>}, {pipeline_mode = #tpu.pipeline_mode<synchronous>, transform_indices = @transform_1, window_bounds = array<i64: 16, 256>}, {transform_indices = @transform_2, window_bounds = array<i64: 1, 2048>}]} {
    %c0 = arith.constant 0 : index
    %c0_0 = arith.constant 0 : index
    %0 = vector.load %arg1[%c0, %c0_0] : memref<3x2048xf32, #tpu.memory_space<vmem>>, vector<1x2048xf32>
    %c1 = arith.constant 1 : index
    %c0_1 = arith.constant 0 : index
    %1 = vector.load %arg1[%c1, %c0_1] : memref<3x2048xf32, #tpu.memory_space<vmem>>, vector<1x2048xf32>
    %c2 = arith.constant 2 : index
    %c0_2 = arith.constant 0 : index
    %2 = vector.load %arg1[%c2, %c0_2] : memref<3x2048xf32, #tpu.memory_space<vmem>>, vector<1x2048xf32>
    %cst = arith.constant 7.500000e+00 : f32
    %3 = vector.broadcast %cst : f32 to vector<1x2048xf32>
    %4 = arith.mulf %0, %3 : vector<1x2048xf32>
    %cst_3 = arith.constant 7.500000e+00 : f32
    %5 = vector.broadcast %cst_3 : f32 to vector<1x2048xf32>
    %6 = arith.addf %4, %5 : vector<1x2048xf32>
    %cst_4 = arith.constant 5.000000e-01 : f32
    %7 = vector.broadcast %cst_4 : f32 to vector<1x2048xf32>
    %8 = arith.addf %6, %7 : vector<1x2048xf32>
    %9 = math.floor %8 : vector<1x2048xf32>
    %10 = arith.fptosi %9 : vector<1x2048xf32> to vector<1x2048xi32>
    %cst_5 = arith.constant 7.500000e+00 : f32
    %11 = vector.broadcast %cst_5 : f32 to vector<1x2048xf32>
    %12 = arith.mulf %1, %11 : vector<1x2048xf32>
    %cst_6 = arith.constant 7.500000e+00 : f32
    %13 = vector.broadcast %cst_6 : f32 to vector<1x2048xf32>
    %14 = arith.addf %12, %13 : vector<1x2048xf32>
    %cst_7 = arith.constant 5.000000e-01 : f32
    %15 = vector.broadcast %cst_7 : f32 to vector<1x2048xf32>
    %16 = arith.addf %14, %15 : vector<1x2048xf32>
    %17 = math.floor %16 : vector<1x2048xf32>
    %18 = arith.fptosi %17 : vector<1x2048xf32> to vector<1x2048xi32>
    %cst_8 = arith.constant 7.500000e+00 : f32
    %19 = vector.broadcast %cst_8 : f32 to vector<1x2048xf32>
    %20 = arith.mulf %2, %19 : vector<1x2048xf32>
    %cst_9 = arith.constant 7.500000e+00 : f32
    %21 = vector.broadcast %cst_9 : f32 to vector<1x2048xf32>
    %22 = arith.addf %20, %21 : vector<1x2048xf32>
    %cst_10 = arith.constant 5.000000e-01 : f32
    %23 = vector.broadcast %cst_10 : f32 to vector<1x2048xf32>
    %24 = arith.addf %22, %23 : vector<1x2048xf32>
    %25 = math.floor %24 : vector<1x2048xf32>
    %26 = arith.fptosi %25 : vector<1x2048xf32> to vector<1x2048xi32>
    %c0_i32 = arith.constant 0 : i32
    %27 = vector.broadcast %c0_i32 : i32 to vector<1x2048xi32>
    %28 = arith.cmpi sge, %10, %27 : vector<1x2048xi32>
    %c16_i32 = arith.constant 16 : i32
    %29 = vector.broadcast %c16_i32 : i32 to vector<1x2048xi32>
    %30 = arith.cmpi slt, %10, %29 : vector<1x2048xi32>
    %31 = arith.andi %28, %30 : vector<1x2048xi1>
    %c0_i32_11 = arith.constant 0 : i32
    %32 = vector.broadcast %c0_i32_11 : i32 to vector<1x2048xi32>
    %33 = arith.cmpi sge, %18, %32 : vector<1x2048xi32>
    %34 = arith.andi %31, %33 : vector<1x2048xi1>
    %c16_i32_12 = arith.constant 16 : i32
    %35 = vector.broadcast %c16_i32_12 : i32 to vector<1x2048xi32>
    %36 = arith.cmpi slt, %18, %35 : vector<1x2048xi32>
    %37 = arith.andi %34, %36 : vector<1x2048xi1>
    %c0_i32_13 = arith.constant 0 : i32
    %38 = vector.broadcast %c0_i32_13 : i32 to vector<1x2048xi32>
    %39 = arith.cmpi sge, %26, %38 : vector<1x2048xi32>
    %40 = arith.andi %37, %39 : vector<1x2048xi1>
    %c16_i32_14 = arith.constant 16 : i32
    %41 = vector.broadcast %c16_i32_14 : i32 to vector<1x2048xi32>
    %42 = arith.cmpi slt, %26, %41 : vector<1x2048xi32>
    %43 = arith.andi %40, %42 : vector<1x2048xi1>
    %c16_i32_15 = arith.constant 16 : i32
    %44 = vector.broadcast %c16_i32_15 : i32 to vector<1x2048xi32>
    %45 = arith.muli %18, %44 : vector<1x2048xi32>
    %46 = arith.addi %45, %26 : vector<1x2048xi32>
    %47 = tpu.iota {dimensions = array<i32: 0>} : vector<256x1xi32>
    %48 = vector.broadcast %47 : vector<256x1xi32> to vector<256x2048xi32>
    %49 = vector.broadcast %46 : vector<1x2048xi32> to vector<256x2048xi32>
    %50 = arith.cmpi eq, %48, %49 : vector<256x2048xi32>
    %51 = arith.extui %50 : vector<256x2048xi1> to vector<256x2048xi32>
    %52 = arith.sitofp %51 : vector<256x2048xi32> to vector<256x2048xf32>
    %53 = arith.truncf %52 : vector<256x2048xf32> to vector<256x2048xbf16>
    %c0_16 = arith.constant 0 : index
    %c0_17 = arith.constant 0 : index
    %54 = vector.load %arg2[%c0_16, %c0_17] : memref<16x256xbf16, #tpu.memory_space<vmem>>, vector<16x256xbf16>
    %cst_18 = arith.constant dense<0.000000e+00> : vector<16x2048xf32>
    %55 = tpu.matmul %54, %53, %cst_18 {dimension_numbers = #tpu.dot_dimension_numbers<[1], [0], [0], [1], [0, 0, 1, 1], [], []>} : vector<16x256xbf16>, vector<256x2048xbf16>, vector<16x2048xf32> -> vector<16x2048xf32>
    %56 = tpu.iota {dimensions = array<i32: 0>} : vector<16x1xi32>
    %57 = vector.broadcast %56 : vector<16x1xi32> to vector<16x2048xi32>
    %58 = vector.broadcast %10 : vector<1x2048xi32> to vector<16x2048xi32>
    %59 = arith.cmpi eq, %57, %58 : vector<16x2048xi32>
    %cst_19 = arith.constant 0.000000e+00 : f32
    %60 = vector.broadcast %cst_19 : f32 to vector<16x2048xf32>
    %61 = arith.select %59, %55, %60 : vector<16x2048xi1>, vector<16x2048xf32>
    %cst_20 = arith.constant dense<0.000000e+00> : vector<2048xf32>
    %62 = vector.multi_reduction <add>, %61, %cst_20 [0] : vector<16x2048xf32> to vector<2048xf32>
    %63 = vector.shape_cast %62 : vector<2048xf32> to vector<1x2048xf32>
    %cst_21 = arith.constant 0.000000e+00 : f32
    %64 = vector.broadcast %cst_21 : f32 to vector<1x2048xf32>
    %65 = arith.select %43, %63, %64 : vector<1x2048xi1>, vector<1x2048xf32>
    %c0_22 = arith.constant 0 : index
    %c0_23 = arith.constant 0 : index
    %66 = vector.load %arg3[%c0_22, %c0_23] : memref<1x2048xf32, #tpu.memory_space<vmem>>, vector<1x2048xf32>
    tpu.vector_store %arg3[%c0_22, %c0_23], %65 {strides = array<i32>} : memref<1x2048xf32, #tpu.memory_space<vmem>>, vector<1x2048xf32>,
    return
  }
  func.func @transform_0(%arg0: i32) -> (i32, i32) {
    %c0_i32 = arith.constant 0 : i32
    %c0_i32_0 = arith.constant 0 : i32
    return %c0_i32, %arg0 : i32, i32
  }
  func.func @transform_1(%arg0: i32) -> (i32, i32) {
    %c0_i32 = arith.constant 0 : i32
    %c0_i32_0 = arith.constant 0 : i32
    %c0_i32_1 = arith.constant 0 : i32
    return %c0_i32, %c0_i32_0 : i32, i32
  }
  func.func @transform_2(%arg0: i32) -> (i32, i32) {
    %c0_i32 = arith.constant 0 : i32
    %c0_i32_0 = arith.constant 0 : i32
    return %c0_i32, %arg0 : i32, i32
  }
}

</mosaic_0001>

<llo_original>
// kernel: tpu_custom_call.1
$region0: #{tpu_custom_call.1}
  #allocation0 [shape = 'u32[]', space=smem, size = 0x4, offset = 0x4, fixed_abs, tag = 'smem constant byte address 0x4 - core index']
  #allocation1 [shape = 'u32[144,128]{1,0:T(1,128)}', space=vmem, size = 0x12000, scoped, tag = 'internal scratch']
  %s0 = inlined_call_operand.hbm [shape: f32[3,10240], index: 0, kind: input, shape index: {}]
  %s1 = inlined_call_operand.hbm [shape: bf16[16,256], index: 1, kind: input, shape index: {}]
  %s2 = inlined_call_operand.hbm [shape: f32[1,10240], index: 2, kind: output, shape index: {}]
  %s3 = sld [smem:[#allocation0]]
  $region49: #{tpu_custom_call.1} parent=0
    _
  %s5 = ssub.s32 1, %s3
  %s6 = scalar_select 0, %s5, %s3
  $region1: #{tpu_custom_call.1} parent=0
    #allocation2 [shape = 'u8[65536]{0}', space=vmem, size = 0x10000, scoped, tag = 'input window, operand 0']
    #allocation3 [shape = 's32[2]{0}', space=sflag, size = 0x8, scoped, tag = 'scoped memory for tpu_custom_call.1']
    #allocation4 [shape = 's32[2]{0}', space=sflag, size = 0x8, scoped, tag = 'scoped memory for tpu_custom_call.1']
    #allocation5 [shape = 'u8[8192]{0}', space=vmem, size = 0x2000, scoped, tag = 'input window, operand 1, single buffered']
    #allocation6 [shape = 's32[1]{0}', space=sflag, size = 0x4, scoped, tag = 'scoped memory for tpu_custom_call.1']
    #allocation7 [shape = 'u8[16384]{0}', space=vmem, size = 0x4000, scoped, tag = 'output window, operand 0']
    %7 = vsyncpa [#allocation3], 0
    %s8 = scalar_lea.sflag [#allocation3], 1
    %9 = vsyncpa %s8, 0
    %10 = vsyncpa [#allocation6], 0
    %11 = vsyncpa [#allocation4], 0
    %s12 = scalar_lea.sflag [#allocation4], 1
    %13 = vsyncpa %s12, 0
    loop: start=0, step=1, limit=7
    $region2: #{tpu_custom_call.1} parent=1 // loop_pre_header
      _
    $region3: #{tpu_custom_call.1} parent=1 // loop_header
      %s15 = sphi 0, %s19
      %p16 = scmp.ge.s32.totalorder %s15, 7
      %s25 = sphi 0, %s27
      %s28 = sphi 0, %s25
      %s29 = sphi 0, %s28
      %s45 = sphi 0, %s29
      %s49 = sphi 0, %s49
      %s51 = sphi 0, %s49
      %s52 = sphi 0, %s51
      %s66 = sphi 0, %s52
      %s72 = sphi 0, %s74
      %s75 = sphi 0, %s72
      %s76 = sphi 0, %s75
      %s92 = sphi 0, %s76
    $region4: #{tpu_custom_call.1} parent=1 // loop_header_branch
      %18 = sbr.rel (%p16) target = $region8
    $region5: #{tpu_custom_call.1} parent=1 // loop_body
      %s20 = ssub.s32 %s15, 1
      %s21 = ssub.s32 %s15, 2
      %s22 = sadd.s32 %s15, 1
      %s23 = ssub.s32 %s15, %s22
      %p24 = scmp.eq.s32.totalorder %s23, 0
      %s26 = sadd.s32 %s25, 1
      %s27 = scalar_select %p24, %s25, %s26
      %p30 = pneg %p24
      %p31 = scmp.eq.s32.totalorder %s15, 4
      %p32 = por %p30, %p31
      %p33 = scmp.ne.s32.totalorder %s25, %s28
      %p34 = scmp.eq.s32.totalorder %s15, 0
      %p35 = por %p33, %p34
      %p36 = scmp.ne.s32.totalorder %s25, %s28
      %p37 = scmp.eq.s32.totalorder %s20, 4
      %p38 = por %p36, %p37
      %p39 = scmp.ne.s32.totalorder %s28, %s29
      %p40 = scmp.eq.s32.totalorder %s20, 0
      %p41 = por %p39, %p40
      %p42 = scmp.ne.s32.totalorder %s28, %s29
      %p43 = scmp.eq.s32.totalorder %s21, 4
      %p44 = por %p42, %p43
      %p46 = scmp.ne.s32.totalorder %s29, %s45
      %p47 = scmp.eq.s32.totalorder %s21, 0
      %p48 = por %p46, %p47
      %s50 = sadd.s32 %s49, 1
      %p53 = scmp.eq.s32.totalorder %s15, 4
      %p54 = scmp.ne.s32.totalorder %s49, %s51
      %p55 = scmp.eq.s32.totalorder %s15, 0
      %p56 = por %p54, %p55
      %p57 = scmp.ne.s32.totalorder %s49, %s51
      %p58 = scmp.eq.s32.totalorder %s20, 4
      %p59 = por %p57, %p58
      %p60 = scmp.ne.s32.totalorder %s51, %s52
      %p61 = scmp.eq.s32.totalorder %s20, 0
      %p62 = por %p60, %p61
      %p63 = scmp.ne.s32.totalorder %s51, %s52
      %p64 = scmp.eq.s32.totalorder %s21, 4
      %p65 = por %p63, %p64
      %p67 = scmp.ne.s32.totalorder %s52, %s66
      %p68 = scmp.eq.s32.totalorder %s21, 0
      %p69 = por %p67, %p68
      %s70 = ssub.s32 %s15, %s22
      %p71 = scmp.eq.s32.totalorder %s70, 0
      %s73 = sadd.s32 %s72, 1
      %s74 = scalar_select %p71, %s72, %s73
      %p77 = pneg %p71
      %p78 = scmp.eq.s32.totalorder %s15, 4
      %p79 = por %p77, %p78
      %p80 = scmp.ne.s32.totalorder %s72, %s75
      %p81 = scmp.eq.s32.totalorder %s15, 0
      %p82 = por %p80, %p81
      %p83 = scmp.ne.s32.totalorder %s72, %s75
      %p84 = scmp.eq.s32.totalorder %s20, 4
      %p85 = por %p83, %p84
      %p86 = scmp.ne.s32.totalorder %s75, %s76
      %p87 = scmp.eq.s32.totalorder %s20, 0
      %p88 = por %p86, %p87
      %p89 = scmp.ne.s32.totalorder %s75, %s76
      %p90 = scmp.eq.s32.totalorder %s21, 4
      %p91 = por %p89, %p90
      %p93 = scmp.ne.s32.totalorder %s76, %s92
      %p94 = scmp.eq.s32.totalorder %s21, 0
      %p95 = por %p93, %p94
      %p96 = scmp.le.s32.totalorder 1, %s15
      %p97 = scmp.lt.s32.totalorder %s15, 6
      %p98 = pnand %p96, %p97
      %p99 = pneg %p98
      // Predicated region
      $region9: #{tpu_custom_call.1} parent=5 // pred_check
        _
      $region10: #{tpu_custom_call.1} parent=5 // pred_check_branch
        %101 = sbr.rel (%p98) target = $region12
      $region11: #{tpu_custom_call.1} parent=5 // pred_region
        %s102 = ssub.s32 %s15, 1
        // Predicated region
        $region13: #{tpu_custom_call.1} parent=11 // pred_check
          %p103 = pneg %p62
        $region14: #{tpu_custom_call.1} parent=11 // pred_check_branch
          %105 = sbr.rel (%p103) target = $region16
        $region15: #{tpu_custom_call.1} parent=11 // pred_region
          %s107 = ssub.s32 256, 256
          %108 = vsyncadd [#allocation6], %s107
          %s109 = sshll.u32 [#allocation5], 4
          %s110 = int_to_ptr.vmem [resolvable:$true] %s109
          %115 = dma.hbm_to_vmem [thread:$0]  %s1, 256, %s110, [#allocation6], 128, 128, 8
        $region16: #{tpu_custom_call.1} parent=11 // pred_fallthru
          _
      $region12: #{tpu_custom_call.1} parent=5 // pred_fallthru
        _
      %p116 = scmp.lt.s32.totalorder %s15, 5
      // Predicated region
      $region17: #{tpu_custom_call.1} parent=5 // pred_check
        %p117 = pneg %p116
      $region18: #{tpu_custom_call.1} parent=5 // pred_check_branch
        %119 = sbr.rel (%p117) target = $region20
      $region19: #{tpu_custom_call.1} parent=5 // pred_region
        // Predicated region
        $region21: #{tpu_custom_call.1} parent=19 // pred_check
          %p120 = pneg %p35
        $region22: #{tpu_custom_call.1} parent=19 // pred_check_branch
          %122 = sbr.rel (%p120) target = $region24
        $region23: #{tpu_custom_call.1} parent=19 // pred_region
          %s123 = sand.u32 %s25, 1
          %s124 = scalar_lea.sflag [#allocation3], %s123
          %s125 = sand.u32 %s25, 1
          %s126 = smul.addr %s125, 64
          %s127 = scalar_lea.vmem [#allocation2], %s126
          %s128 = smul.u32 16, %s15
          %s130 = ssub.s32 1024, 1024
          %131 = vsyncadd %s124, %s130
          %s132 = smul.addr %s128, 64
          %s133 = scalar_lea.hbm %s0, %s132
          %s135 = sshll.u32 %s127, 4
          %s136 = int_to_ptr.vmem [resolvable:$true] %s135
          %138 = dma.hbm_to_vmem [thread:$0]  %s133, 1024, %s136, %s124
        $region24: #{tpu_custom_call.1} parent=19 // pred_fallthru
          _
      $region20: #{tpu_custom_call.1} parent=5 // pred_fallthru
        _
      %p139 = scmp.le.s32.totalorder 1, %s15
      %p140 = scmp.lt.s32.totalorder %s15, 6
      %p141 = pnand %p139, %p140
      %p142 = pneg %p141
      // Predicated region
      $region25: #{tpu_custom_call.1} parent=5 // pred_check
        _
      $region26: #{tpu_custom_call.1} parent=5 // pred_check_branch
        %144 = sbr.rel (%p141) target = $region28
      $region27: #{tpu_custom_call.1} parent=5 // pred_region
        %s145 = ssub.s32 %s15, 1
        %s146 = sand.u32 %s28, 1
        %s147 = scalar_lea.sflag [#allocation3], %s146
        %s148 = sand.u32 %s28, 1
        %s149 = smul.addr %s148, 64
        %s150 = scalar_lea.vmem [#allocation2], %s149
        // Predicated region
        $region29: #{tpu_custom_call.1} parent=27 // pred_check
          %p151 = pneg %p41
        $region30: #{tpu_custom_call.1} parent=27 // pred_check_branch
          %153 = sbr.rel (%p151) target = $region32
        $region31: #{tpu_custom_call.1} parent=27 // pred_region
          %154 = dma.done %s147, 1024
        $region32: #{tpu_custom_call.1} parent=27 // pred_fallthru
          _
        // Predicated region
        $region33: #{tpu_custom_call.1} parent=27 // pred_check
          %p155 = pneg %p62
        $region34: #{tpu_custom_call.1} parent=27 // pred_check_branch
          %157 = sbr.rel (%p155) target = $region36
        $region35: #{tpu_custom_call.1} parent=27 // pred_region
          %158 = dma.done [#allocation6], 256
        $region36: #{tpu_custom_call.1} parent=27 // pred_fallthru
          _
        %s159 = sand.u32 %s28, 1
        %s160 = scalar_lea.sflag [#allocation3], %s159
        %s161 = sand.u32 %s28, 1
        %s162 = smul.addr %s161, 64
        %s163 = scalar_lea.vmem [#allocation2], %s162
        %p164 = pneg %p41
        %p165 = pneg %p38
        %p166 = pneg %p62
        %p167 = pneg %p59
        %p168 = pneg %p88
        %p169 = pneg %p85
        %s170 = sand.u32 %s75, 1
        %s171 = scalar_lea.sflag [#allocation4], %s170
        %s172 = sand.u32 %s75, 1
        %s173 = smul.addr %s172, 16
        %s174 = scalar_lea.vmem [#allocation7], %s173
        %s175 = smul.u32 16, %s20
        %s176 = smul.u32 16, %s20
        %v177 = vld [vmem:[%s150] ss:$4 sm:$0xff]
        %s178 = scalar_lea.vmem %s150, 32 [#allocation2]
        %v179 = vld [vmem:[%s178] ss:$4 sm:$0xff]
        %s180 = scalar_lea.vmem %s150, 1 [#allocation2]
        %v181 = vld [vmem:[%s180] ss:$4 sm:$0xff]
        %s182 = scalar_lea.vmem %s150, 33 [#allocation2]
        %v183 = vld [vmem:[%s182] ss:$4 sm:$0xff]
        %s184 = scalar_lea.vmem %s150, 2 [#allocation2]
        %v185 = vld [vmem:[%s184] ss:$4 sm:$0xff]
        %s186 = scalar_lea.vmem %s150, 34 [#allocation2]
        %v187 = vld [vmem:[%s186] ss:$4 sm:$0xff]
        %v188 = vmul.f32 %v177, 7.5
        %v189 = vmul.f32 %v179, 7.5
        %v190 = vadd.f32 %v188, 7.5
        %v191 = vadd.f32 %v189, 7.5
        %v192 = vadd.f32 %v190, 0.5
        %v193 = vadd.f32 %v191, 0.5
        %v194 = vfloor.f32 %v192
        %v195 = vfloor.f32 %v193
        %v196 = vcvt.f32.s32.to.zero.pseudo %v194
        %v197 = vcvt.f32.s32.to.zero.pseudo %v195
        %v198 = vmul.f32 %v181, 7.5
        %v199 = vmul.f32 %v183, 7.5
        %v200 = vadd.f32 %v198, 7.5
        %v201 = vadd.f32 %v199, 7.5
        %v202 = vadd.f32 %v200, 0.5
        %v203 = vadd.f32 %v201, 0.5
        %v204 = vfloor.f32 %v202
        %v205 = vfloor.f32 %v203
        %v206 = vcvt.f32.s32.to.zero.pseudo %v204
        %v207 = vcvt.f32.s32.to.zero.pseudo %v205
        %v208 = vmul.f32 %v185, 7.5
        %v209 = vmul.f32 %v187, 7.5
        %v210 = vadd.f32 %v208, 7.5
        %v211 = vadd.f32 %v209, 7.5
        %v212 = vadd.f32 %v210, 0.5
        %v213 = vadd.f32 %v211, 0.5
        %v214 = vfloor.f32 %v212
        %v215 = vfloor.f32 %v213
        %v216 = vcvt.f32.s32.to.zero.pseudo %v214
        %v217 = vcvt.f32.s32.to.zero.pseudo %v215
        %vm218 = vcmp.ge.s32.totalorder %v196, 0
        %vm219 = vcmp.ge.s32.totalorder %v197, 0
        %vm220 = vcmp.lt.s32.totalorder %v196, 16
        %vm221 = vcmp.lt.s32.totalorder %v197, 16
        %vm222 = vmand %vm218, %vm220
        %vm223 = vmand %vm219, %vm221
        %vm224 = vcmp.ge.s32.totalorder %v206, 0
        %vm225 = vcmp.ge.s32.totalorder %v207, 0
        %vm226 = vmand %vm222, %vm224
        %vm227 = vmand %vm223, %vm225
        %vm228 = vcmp.lt.s32.totalorder %v206, 16
        %vm229 = vcmp.lt.s32.totalorder %v207, 16
        %vm230 = vmand %vm226, %vm228
        %vm231 = vmand %vm227, %vm229
        %vm232 = vcmp.ge.s32.totalorder %v216, 0
        %vm233 = vcmp.ge.s32.totalorder %v217, 0
        %vm234 = vmand %vm230, %vm232
        %vm235 = vmand %vm231, %vm233
        %vm236 = vcmp.lt.s32.totalorder %v216, 16
        %vm237 = vcmp.lt.s32.totalorder %v217, 16
        %vm238 = vmand %vm234, %vm236
        %vm239 = vmand %vm235, %vm237
        %v240 = vmul.u32 %v206, 16
        %v241 = vmul.u32 %v207, 16
        %v242 = vadd.s32 %v240, %v216
        %v243 = vadd.s32 %v241, %v217
        %v244 = vlaneseq
        %v245 = vshrl.u32 %v244, 7
        %v246 = vadd.s32 %v245, 8
        %v247 = vadd.s32 %v245, 16
        %v248 = vadd.s32 %v245, 24
        %v249 = vadd.s32 %v245, 32
        %v250 = vadd.s32 %v245, 40
        %v251 = vadd.s32 %v245, 48
        %v252 = vadd.s32 %v245, 56
        %v253 = vadd.s32 %v245, 64
        %v254 = vadd.s32 %v245, 72
        %v255 = vadd.s32 %v245, 80
        %v256 = vadd.s32 %v245, 88
        %v257 = vadd.s32 %v245, 96
        %v258 = vadd.s32 %v245, 104
        %v259 = vadd.s32 %v245, 112
        %v260 = vadd.s32 %v245, 120
        %v261 = vadd.s32 %v245, 128
        %v262 = vadd.s32 %v245, 136
        %v263 = vadd.s32 %v245, 144
        %v264 = vadd.s32 %v245, 152
        %v265 = vadd.s32 %v245, 160
        %v266 = vadd.s32 %v245, 168
        %v267 = vadd.s32 %v245, 176
        %v268 = vadd.s32 %v245, 184
        %v269 = vadd.s32 %v245, 192
        %v270 = vadd.s32 %v245, 200
        %v271 = vadd.s32 %v245, 208
        %v272 = vadd.s32 %v245, 216
        %v273 = vadd.s32 %v245, 224
        %v274 = vadd.s32 %v245, 232
        %v275 = vadd.s32 %v245, 240
        %v276 = vadd.s32 %v245, 248
        %v277 = vlaneseq
        %v278 = vshrl.u32 %v277, 7
        %v279 = vsub.s32 0, %v278
        %v280 = vrot.slane %v242, %v279
        %v281 = vlaneseq
        %v282 = vshrl.u32 %v281, 7
        %v283 = vsub.s32 1, %v282
        %v284 = vrot.slane %v242, %v283
        %v285 = vlaneseq
        %v286 = vshrl.u32 %v285, 7
        %v287 = vsub.s32 2, %v286
        %v288 = vrot.slane %v242, %v287
        %v289 = vlaneseq
        %v290 = vshrl.u32 %v289, 7
        %v291 = vsub.s32 3, %v290
        %v292 = vrot.slane %v242, %v291
        %v293 = vlaneseq
        %v294 = vshrl.u32 %v293, 7
        %v295 = vsub.s32 4, %v294
        %v296 = vrot.slane %v242, %v295
        %v297 = vlaneseq
        %v298 = vshrl.u32 %v297, 7
        %v299 = vsub.s32 5, %v298
        %v300 = vrot.slane %v242, %v299
        %v301 = vlaneseq
        %v302 = vshrl.u32 %v301, 7
        %v303 = vsub.s32 6, %v302
        %v304 = vrot.slane %v242, %v303
        %v305 = vlaneseq
        %v306 = vshrl.u32 %v305, 7
        %v307 = vsub.s32 7, %v306
        %v308 = vrot.slane %v242, %v307
        %v309 = vlaneseq
        %v310 = vshrl.u32 %v309, 7
        %v311 = vsub.s32 0, %v310
        %v312 = vrot.slane %v243, %v311
        %v313 = vlaneseq
        %v314 = vshrl.u32 %v313, 7
        %v315 = vsub.s32 1, %v314
        %v316 = vrot.slane %v243, %v315
        %v317 = vlaneseq
        %v318 = vshrl.u32 %v317, 7
        %v319 = vsub.s32 2, %v318
        %v320 = vrot.slane %v243, %v319
        %v321 = vlaneseq
        %v322 = vshrl.u32 %v321, 7
        %v323 = vsub.s32 3, %v322
        %v324 = vrot.slane %v243, %v323
        %v325 = vlaneseq
        %v326 = vshrl.u32 %v325, 7
        %v327 = vsub.s32 4, %v326
        %v328 = vrot.slane %v243, %v327
        %v329 = vlaneseq
        %v330 = vshrl.u32 %v329, 7
        %v331 = vsub.s32 5, %v330
        %v332 = vrot.slane %v243, %v331
        %v333 = vlaneseq
        %v334 = vshrl.u32 %v333, 7
        %v335 = vsub.s32 6, %v334
        %v336 = vrot.slane %v243, %v335
        %v337 = vlaneseq
        %v338 = vshrl.u32 %v337, 7
        %v339 = vsub.s32 7, %v338
        %v340 = vrot.slane %v243, %v339
        %vm341 = vcmp.eq.s32.totalorder %v245, %v280
        %vm342 = vcmp.eq.s32.totalorder %v245, %v284
        %vm343 = vcmp.eq.s32.totalorder %v245, %v288
        %vm344 = vcmp.eq.s32.totalorder %v245, %v292
        %vm345 = vcmp.eq.s32.totalorder %v245, %v296
        %vm346 = vcmp.eq.s32.totalorder %v245, %v300
        %vm347 = vcmp.eq.s32.totalorder %v245, %v304
        %vm348 = vcmp.eq.s32.totalorder %v245, %v308
        %vm349 = vcmp.eq.s32.totalorder %v245, %v312
        %vm350 = vcmp.eq.s32.totalorder %v245, %v316
        %vm351 = vcmp.eq.s32.totalorder %v245, %v320
        %vm352 = vcmp.eq.s32.totalorder %v245, %v324
        %vm353 = vcmp.eq.s32.totalorder %v245, %v328
        %vm354 = vcmp.eq.s32.totalorder %v245, %v332
        %vm355 = vcmp.eq.s32.totalorder %v245, %v336
        %vm356 = vcmp.eq.s32.totalorder %v245, %v340
        %vm357 = vcmp.eq.s32.totalorder %v246, %v280
        %vm358 = vcmp.eq.s32.totalorder %v246, %v284
        %vm359 = vcmp.eq.s32.totalorder %v246, %v288
        %vm360 = vcmp.eq.s32.totalorder %v246, %v292
        %vm361 = vcmp.eq.s32.totalorder %v246, %v296
        %vm362 = vcmp.eq.s32.totalorder %v246, %v300
        %vm363 = vcmp.eq.s32.totalorder %v246, %v304
        %vm364 = vcmp.eq.s32.totalorder %v246, %v308
        %vm365 = vcmp.eq.s32.totalorder %v246, %v312
        %vm366 = vcmp.eq.s32.totalorder %v246, %v316
        %vm367 = vcmp.eq.s32.totalorder %v246, %v320
        %vm368 = vcmp.eq.s32.totalorder %v246, %v324
        %vm369 = vcmp.eq.s32.totalorder %v246, %v328
        %vm370 = vcmp.eq.s32.totalorder %v246, %v332
        %vm371 = vcmp.eq.s32.totalorder %v246, %v336
        %vm372 = vcmp.eq.s32.totalorder %v246, %v340
        %vm373 = vcmp.eq.s32.totalorder %v247, %v280
        %vm374 = vcmp.eq.s32.totalorder %v247, %v284
        %vm375 = vcmp.eq.s32.totalorder %v247, %v288
        %vm376 = vcmp.eq.s32.totalorder %v247, %v292
        %vm377 = vcmp.eq.s32.totalorder %v247, %v296
        %vm378 = vcmp.eq.s32.totalorder %v247, %v300
        %vm379 = vcmp.eq.s32.totalorder %v247, %v304
        %vm380 = vcmp.eq.s32.totalorder %v247, %v308
        %vm381 = vcmp.eq.s32.totalorder %v247, %v312
        %vm382 = vcmp.eq.s32.totalorder %v247, %v316
        %vm383 = vcmp.eq.s32.totalorder %v247, %v320
        %vm384 = vcmp.eq.s32.totalorder %v247, %v324
        %vm385 = vcmp.eq.s32.totalorder %v247, %v328
        %vm386 = vcmp.eq.s32.totalorder %v247, %v332
        %vm387 = vcmp.eq.s32.totalorder %v247, %v336
        %vm388 = vcmp.eq.s32.totalorder %v247, %v340
        %vm389 = vcmp.eq.s32.totalorder %v248, %v280
        %vm390 = vcmp.eq.s32.totalorder %v248, %v284
        %vm391 = vcmp.eq.s32.totalorder %v248, %v288
        %vm392 = vcmp.eq.s32.totalorder %v248, %v292
        %vm393 = vcmp.eq.s32.totalorder %v248, %v296
        %vm394 = vcmp.eq.s32.totalorder %v248, %v300
        %vm395 = vcmp.eq.s32.totalorder %v248, %v304
        %vm396 = vcmp.eq.s32.totalorder %v248, %v308
        %vm397 = vcmp.eq.s32.totalorder %v248, %v312
        %vm398 = vcmp.eq.s32.totalorder %v248, %v316
        %vm399 = vcmp.eq.s32.totalorder %v248, %v320
        %vm400 = vcmp.eq.s32.totalorder %v248, %v324
        %vm401 = vcmp.eq.s32.totalorder %v248, %v328
        %vm402 = vcmp.eq.s32.totalorder %v248, %v332
        %vm403 = vcmp.eq.s32.totalorder %v248, %v336
        %vm404 = vcmp.eq.s32.totalorder %v248, %v340
        %vm405 = vcmp.eq.s32.totalorder %v249, %v280
        %vm406 = vcmp.eq.s32.totalorder %v249, %v284
        %vm407 = vcmp.eq.s32.totalorder %v249, %v288
        %vm408 = vcmp.eq.s32.totalorder %v249, %v292
        %vm409 = vcmp.eq.s32.totalorder %v249, %v296
        %vm410 = vcmp.eq.s32.totalorder %v249, %v300
        %vm411 = vcmp.eq.s32.totalorder %v249, %v304
        %vm412 = vcmp.eq.s32.totalorder %v249, %v308
        %vm413 = vcmp.eq.s32.totalorder %v249, %v312
        %vm414 = vcmp.eq.s32.totalorder %v249, %v316
        %vm415 = vcmp.eq.s32.totalorder %v249, %v320
        %vm416 = vcmp.eq.s32.totalorder %v249, %v324
        %vm417 = vcmp.eq.s32.totalorder %v249, %v328
        %vm418 = vcmp.eq.s32.totalorder %v249, %v332
        %vm419 = vcmp.eq.s32.totalorder %v249, %v336
        %vm420 = vcmp.eq.s32.totalorder %v249, %v340
        %vm421 = vcmp.eq.s32.totalorder %v250, %v280
        %vm422 = vcmp.eq.s32.totalorder %v250, %v284
        %vm423 = vcmp.eq.s32.totalorder %v250, %v288
        %vm424 = vcmp.eq.s32.totalorder %v250, %v292
        %vm425 = vcmp.eq.s32.totalorder %v250, %v296
        %vm426 = vcmp.eq.s32.totalorder %v250, %v300
        %vm427 = vcmp.eq.s32.totalorder %v250, %v304
        %vm428 = vcmp.eq.s32.totalorder %v250, %v308
        %vm429 = vcmp.eq.s32.totalorder %v250, %v312
        %vm430 = vcmp.eq.s32.totalorder %v250, %v316
        %vm431 = vcmp.eq.s32.totalorder %v250, %v320
        %vm432 = vcmp.eq.s32.totalorder %v250, %v324
        %vm433 = vcmp.eq.s32.totalorder %v250, %v328
        %vm434 = vcmp.eq.s32.totalorder %v250, %v332
        %vm435 = vcmp.eq.s32.totalorder %v250, %v336
        %vm436 = vcmp.eq.s32.totalorder %v250, %v340
        %vm437 = vcmp.eq.s32.totalorder %v251, %v280
        %vm438 = vcmp.eq.s32.totalorder %v251, %v284
        %vm439 = vcmp.eq.s32.totalorder %v251, %v288
        %vm440 = vcmp.eq.s32.totalorder %v251, %v292
        %vm441 = vcmp.eq.s32.totalorder %v251, %v296
        %vm442 = vcmp.eq.s32.totalorder %v251, %v300
        %vm443 = vcmp.eq.s32.totalorder %v251, %v304
        %vm444 = vcmp.eq.s32.totalorder %v251, %v308
        %vm445 = vcmp.eq.s32.totalorder %v251, %v312
        %vm446 = vcmp.eq.s32.totalorder %v251, %v316
        %vm447 = vcmp.eq.s32.totalorder %v251, %v320
        %vm448 = vcmp.eq.s32.totalorder %v251, %v324
        %vm449 = vcmp.eq.s32.totalorder %v251, %v328
        %vm450 = vcmp.eq.s32.totalorder %v251, %v332
        %vm451 = vcmp.eq.s32.totalorder %v251, %v336
        %vm452 = vcmp.eq.s32.totalorder %v251, %v340
        %vm453 = vcmp.eq.s32.totalorder %v252, %v280
        %vm454 = vcmp.eq.s32.totalorder %v252, %v284
        %vm455 = vcmp.eq.s32.totalorder %v252, %v288
        %vm456 = vcmp.eq.s32.totalorder %v252, %v292
        %vm457 = vcmp.eq.s32.totalorder %v252, %v296
        %vm458 = vcmp.eq.s32.totalorder %v252, %v300
        %vm459 = vcmp.eq.s32.totalorder %v252, %v304
        %vm460 = vcmp.eq.s32.totalorder %v252, %v308
        %vm461 = vcmp.eq.s32.totalorder %v252, %v312
        %vm462 = vcmp.eq.s32.totalorder %v252, %v316
        %vm463 = vcmp.eq.s32.totalorder %v252, %v320
        %vm464 = vcmp.eq.s32.totalorder %v252, %v324
        %vm465 = vcmp.eq.s32.totalorder %v252, %v328
        %vm466 = vcmp.eq.s32.totalorder %v252, %v332
        %vm467 = vcmp.eq.s32.totalorder %v252, %v336
        %vm468 = vcmp.eq.s32.totalorder %v252, %v340
        %vm469 = vcmp.eq.s32.totalorder %v253, %v280
        %vm470 = vcmp.eq.s32.totalorder %v253, %v284
        %vm471 = vcmp.eq.s32.totalorder %v253, %v288
        %vm472 = vcmp.eq.s32.totalorder %v253, %v292
        %vm473 = vcmp.eq.s32.totalorder %v253, %v296
        %vm474 = vcmp.eq.s32.totalorder %v253, %v300
        %vm475 = vcmp.eq.s32.totalorder %v253, %v304
        %vm476 = vcmp.eq.s32.totalorder %v253, %v308
        %vm477 = vcmp.eq.s32.totalorder %v253, %v312
        %vm478 = vcmp.eq.s32.totalorder %v253, %v316
        %vm479 = vcmp.eq.s32.totalorder %v253, %v320
        %vm480 = vcmp.eq.s32.totalorder %v253, %v324
        %vm481 = vcmp.eq.s32.totalorder %v253, %v328
        %vm482 = vcmp.eq.s32.totalorder %v253, %v332
        %vm483 = vcmp.eq.s32.totalorder %v253, %v336
        %vm484 = vcmp.eq.s32.totalorder %v253, %v340
        %vm485 = vcmp.eq.s32.totalorder %v254, %v280
        %vm486 = vcmp.eq.s32.totalorder %v254, %v284
        %vm487 = vcmp.eq.s32.totalorder %v254, %v288
        %vm488 = vcmp.eq.s32.totalorder %v254, %v292
        %vm489 = vcmp.eq.s32.totalorder %v254, %v296
        %vm490 = vcmp.eq.s32.totalorder %v254, %v300
        %vm491 = vcmp.eq.s32.totalorder %v254, %v304
        %vm492 = vcmp.eq.s32.totalorder %v254, %v308
        %vm493 = vcmp.eq.s32.totalorder %v254, %v312
        %vm494 = vcmp.eq.s32.totalorder %v254, %v316
        %vm495 = vcmp.eq.s32.totalorder %v254, %v320
        %vm496 = vcmp.eq.s32.totalorder %v254, %v324
        %vm497 = vcmp.eq.s32.totalorder %v254, %v328
        %vm498 = vcmp.eq.s32.totalorder %v254, %v332
        %vm499 = vcmp.eq.s32.totalorder %v254, %v336
        %vm500 = vcmp.eq.s32.totalorder %v254, %v340
        %vm501 = vcmp.eq.s32.totalorder %v255, %v280
        %vm502 = vcmp.eq.s32.totalorder %v255, %v284
        %vm503 = vcmp.eq.s32.totalorder %v255, %v288
        %vm504 = vcmp.eq.s32.totalorder %v255, %v292
        %vm505 = vcmp.eq.s32.totalorder %v255, %v296
        %vm506 = vcmp.eq.s32.totalorder %v255, %v300
        %vm507 = vcmp.eq.s32.totalorder %v255, %v304
        %vm508 = vcmp.eq.s32.totalorder %v255, %v308
        %vm509 = vcmp.eq.s32.totalorder %v255, %v312
        %vm510 = vcmp.eq.s32.totalorder %v255, %v316
        %vm511 = vcmp.eq.s32.totalorder %v255, %v320
        %vm512 = vcmp.eq.s32.totalorder %v255, %v324
        %vm513 = vcmp.eq.s32.totalorder %v255, %v328
        %vm514 = vcmp.eq.s32.totalorder %v255, %v332
        %vm515 = vcmp.eq.s32.totalorder %v255, %v336
        %vm516 = vcmp.eq.s32.totalorder %v255, %v340
        %vm517 = vcmp.eq.s32.totalorder %v256, %v280
        %vm518 = vcmp.eq.s32.totalorder %v256, %v284
        %vm519 = vcmp.eq.s32.totalorder %v256, %v288
        %vm520 = vcmp.eq.s32.totalorder %v256, %v292
        %vm521 = vcmp.eq.s32.totalorder %v256, %v296
        %vm522 = vcmp.eq.s32.totalorder %v256, %v300
        %vm523 = vcmp.eq.s32.totalorder %v256, %v304
        %vm524 = vcmp.eq.s32.totalorder %v256, %v308
        %vm525 = vcmp.eq.s32.totalorder %v256, %v312
        %vm526 = vcmp.eq.s32.totalorder %v256, %v316
        %vm527 = vcmp.eq.s32.totalorder %v256, %v320
        %vm528 = vcmp.eq.s32.totalorder %v256, %v324
        %vm529 = vcmp.eq.s32.totalorder %v256, %v328
        %vm530 = vcmp.eq.s32.totalorder %v256, %v332
        %vm531 = vcmp.eq.s32.totalorder %v256, %v336
        %vm532 = vcmp.eq.s32.totalorder %v256, %v340
        %vm533 = vcmp.eq.s32.totalorder %v257, %v280
        %vm534 = vcmp.eq.s32.totalorder %v257, %v284
        %vm535 = vcmp.eq.s32.totalorder %v257, %v288
        %vm536 = vcmp.eq.s32.totalorder %v257, %v292
        %vm537 = vcmp.eq.s32.totalorder %v257, %v296
        %vm538 = vcmp.eq.s32.totalorder %v257, %v300
        %vm539 = vcmp.eq.s32.totalorder %v257, %v304
        %vm540 = vcmp.eq.s32.totalorder %v257, %v308
        %vm541 = vcmp.eq.s32.totalorder %v257, %v312
        %vm542 = vcmp.eq.s32.totalorder %v257, %v316
        %vm543 = vcmp.eq.s32.totalorder %v257, %v320
        %vm544 = vcmp.eq.s32.totalorder %v257, %v324
        %vm545 = vcmp.eq.s32.totalorder %v257, %v328
        %vm546 = vcmp.eq.s32.totalorder %v257, %v332
        %vm547 = vcmp.eq.s32.totalorder %v257, %v336
        %vm548 = vcmp.eq.s32.totalorder %v257, %v340
        %vm549 = vcmp.eq.s32.totalorder %v258, %v280
        %vm550 = vcmp.eq.s32.totalorder %v258, %v284
        %vm551 = vcmp.eq.s32.totalorder %v258, %v288
        %vm552 = vcmp.eq.s32.totalorder %v258, %v292
        %vm553 = vcmp.eq.s32.totalorder %v258, %v296
        %vm554 = vcmp.eq.s32.totalorder %v258, %v300
        %vm555 = vcmp.eq.s32.totalorder %v258, %v304
        %vm556 = vcmp.eq.s32.totalorder %v258, %v308
        %vm557 = vcmp.eq.s32.totalorder %v258, %v312
        %vm558 = vcmp.eq.s32.totalorder %v258, %v316
        %vm559 = vcmp.eq.s32.totalorder %v258, %v320
        %vm560 = vcmp.eq.s32.totalorder %v258, %v324
        %vm561 = vcmp.eq.s32.totalorder %v258, %v328
        %vm562 = vcmp.eq.s32.totalorder %v258, %v332
        %vm563 = vcmp.eq.s32.totalorder %v258, %v336
        %vm564 = vcmp.eq.s32.totalorder %v258, %v340
        %vm565 = vcmp.eq.s32.totalorder %v259, %v280
        %vm566 = vcmp.eq.s32.totalorder %v259, %v284
        %vm567 = vcmp.eq.s32.totalorder %v259, %v288
        %vm568 = vcmp.eq.s32.totalorder %v259, %v292
        %vm569 = vcmp.eq.s32.totalorder %v259, %v296
        %vm570 = vcmp.eq.s32.totalorder %v259, %v300
        %vm571 = vcmp.eq.s32.totalorder %v259, %v304
        %vm572 = vcmp.eq.s32.totalorder %v259, %v308
        %vm573 = vcmp.eq.s32.totalorder %v259, %v312
        %vm574 = vcmp.eq.s32.totalorder %v259, %v316
        %vm575 = vcmp.eq.s32.totalorder %v259, %v320
        %vm576 = vcmp.eq.s32.totalorder %v259, %v324
        %vm577 = vcmp.eq.s32.totalorder %v259, %v328
        %vm578 = vcmp.eq.s32.totalorder %v259, %v332
        %vm579 = vcmp.eq.s32.totalorder %v259, %v336
        %vm580 = vcmp.eq.s32.totalorder %v259, %v340
        %vm581 = vcmp.eq.s32.totalorder %v260, %v280
        %vm582 = vcmp.eq.s32.totalorder %v260, %v284
        %vm583 = vcmp.eq.s32.totalorder %v260, %v288
        %vm584 = vcmp.eq.s32.totalorder %v260, %v292
        %vm585 = vcmp.eq.s32.totalorder %v260, %v296
        %vm586 = vcmp.eq.s32.totalorder %v260, %v300
        %vm587 = vcmp.eq.s32.totalorder %v260, %v304
        %vm588 = vcmp.eq.s32.totalorder %v260, %v308
        %vm589 = vcmp.eq.s32.totalorder %v260, %v312
        %vm590 = vcmp.eq.s32.totalorder %v260, %v316
        %vm591 = vcmp.eq.s32.totalorder %v260, %v320
        %vm592 = vcmp.eq.s32.totalorder %v260, %v324
        %vm593 = vcmp.eq.s32.totalorder %v260, %v328
        %vm594 = vcmp.eq.s32.totalorder %v260, %v332
        %vm595 = vcmp.eq.s32.totalorder %v260, %v336
        %vm596 = vcmp.eq.s32.totalorder %v260, %v340
        %vm597 = vcmp.eq.s32.totalorder %v261, %v280
        %vm598 = vcmp.eq.s32.totalorder %v261, %v284
        %vm599 = vcmp.eq.s32.totalorder %v261, %v288
        %vm600 = vcmp.eq.s32.totalorder %v261, %v292
        %vm601 = vcmp.eq.s32.totalorder %v261, %v296
        %vm602 = vcmp.eq.s32.totalorder %v261, %v300
        %vm603 = vcmp.eq.s32.totalorder %v261, %v304
        %vm604 = vcmp.eq.s32.totalorder %v261, %v308
        %vm605 = vcmp.eq.s32.totalorder %v261, %v312
        %vm606 = vcmp.eq.s32.totalorder %v261, %v316
        %vm607 = vcmp.eq.s32.totalorder %v261, %v320
        %vm608 = vcmp.eq.s32.totalorder %v261, %v324
        %vm609 = vcmp.eq.s32.totalorder %v261, %v328
        %vm610 = vcmp.eq.s32.totalorder %v261, %v332
        %vm611 = vcmp.eq.s32.totalorder %v261, %v336
        %vm612 = vcmp.eq.s32.totalorder %v261, %v340
        %vm613 = vcmp.eq.s32.totalorder %v262, %v280
        %vm614 = vcmp.eq.s32.totalorder %v262, %v284
        %vm615 = vcmp.eq.s32.totalorder %v262, %v288
        %vm616 = vcmp.eq.s32.totalorder %v262, %v292
        %vm617 = vcmp.eq.s32.totalorder %v262, %v296
        %vm618 = vcmp.eq.s32.totalorder %v262, %v300
        %vm619 = vcmp.eq.s32.totalorder %v262, %v304
        %vm620 = vcmp.eq.s32.totalorder %v262, %v308
        %vm621 = vcmp.eq.s32.totalorder %v262, %v312
        %vm622 = vcmp.eq.s32.totalorder %v262, %v316
        %vm623 = vcmp.eq.s32.totalorder %v262, %v320
        %vm624 = vcmp.eq.s32.totalorder %v262, %v324
        %vm625 = vcmp.eq.s32.totalorder %v262, %v328
        %vm626 = vcmp.eq.s32.totalorder %v262, %v332
        %vm627 = vcmp.eq.s32.totalorder %v262, %v336
        %vm628 = vcmp.eq.s32.totalorder %v262, %v340
        %vm629 = vcmp.eq.s32.totalorder %v263, %v280
        %vm630 = vcmp.eq.s32.totalorder %v263, %v284
        %vm631 = vcmp.eq.s32.totalorder %v263, %v288
        %vm632 = vcmp.eq.s32.totalorder %v263, %v292
        %vm633 = vcmp.eq.s32.totalorder %v263, %v296
        %vm634 = vcmp.eq.s32.totalorder %v263, %v300
        %vm635 = vcmp.eq.s32.totalorder %v263, %v304
        %vm636 = vcmp.eq.s32.totalorder %v263, %v308
        %vm637 = vcmp.eq.s32.totalorder %v263, %v312
        %vm638 = vcmp.eq.s32.totalorder %v263, %v316
        %vm639 = vcmp.eq.s32.totalorder %v263, %v320
        %vm640 = vcmp.eq.s32.totalorder %v263, %v324
        %vm641 = vcmp.eq.s32.totalorder %v263, %v328
        %vm642 = vcmp.eq.s32.totalorder %v263, %v332
        %vm643 = vcmp.eq.s32.totalorder %v263, %v336
        %vm644 = vcmp.eq.s32.totalorder %v263, %v340
        %vm645 = vcmp.eq.s32.totalorder %v264, %v280
        %vm646 = vcmp.eq.s32.totalorder %v264, %v284
        %vm647 = vcmp.eq.s32.totalorder %v264, %v288
        %vm648 = vcmp.eq.s32.totalorder %v264, %v292
        %vm649 = vcmp.eq.s32.totalorder %v264, %v296
        %vm650 = vcmp.eq.s32.totalorder %v264, %v300
        %vm651 = vcmp.eq.s32.totalorder %v264, %v304
        %vm652 = vcmp.eq.s32.totalorder %v264, %v308
        %vm653 = vcmp.eq.s32.totalorder %v264, %v312
        %vm654 = vcmp.eq.s32.totalorder %v264, %v316
        %vm655 = vcmp.eq.s32.totalorder %v264, %v320
        %vm656 = vcmp.eq.s32.totalorder %v264, %v324
        %vm657 = vcmp.eq.s32.totalorder %v264, %v328
        %vm658 = vcmp.eq.s32.totalorder %v264, %v332
        %vm659 = vcmp.eq.s32.totalorder %v264, %v336
        %vm660 = vcmp.eq.s32.totalorder %v264, %v340
        %vm661 = vcmp.eq.s32.totalorder %v265, %v280
        %vm662 = vcmp.eq.s32.totalorder %v265, %v284
        %vm663 = vcmp.eq.s32.totalorder %v265, %v288
        %vm664 = vcmp.eq.s32.totalorder %v265, %v292
        %vm665 = vcmp.eq.s32.totalorder %v265, %v296
        %vm666 = vcmp.eq.s32.totalorder %v265, %v300
        %vm667 = vcmp.eq.s32.totalorder %v265, %v304
        %vm668 = vcmp.eq.s32.totalorder %v265, %v308
        %vm669 = vcmp.eq.s32.totalorder %v265, %v312
        %vm670 = vcmp.eq.s32.totalorder %v265, %v316
        %vm671 = vcmp.eq.s32.totalorder %v265, %v320
        %vm672 = vcmp.eq.s32.totalorder %v265, %v324
        %vm673 = vcmp.eq.s32.totalorder %v265, %v328
        %vm674 = vcmp.eq.s32.totalorder %v265, %v332
        %vm675 = vcmp.eq.s32.totalorder %v265, %v336
        %vm676 = vcmp.eq.s32.totalorder %v265, %v340
        %vm677 = vcmp.eq.s32.totalorder %v266, %v280
        %vm678 = vcmp.eq.s32.totalorder %v266, %v284
        %vm679 = vcmp.eq.s32.totalorder %v266, %v288
        %vm680 = vcmp.eq.s32.totalorder %v266, %v292
        %vm681 = vcmp.eq.s32.totalorder %v266, %v296
        %vm682 = vcmp.eq.s32.totalorder %v266, %v300
        %vm683 = vcmp.eq.s32.totalorder %v266, %v304
        %vm684 = vcmp.eq.s32.totalorder %v266, %v308
        %vm685 = vcmp.eq.s32.totalorder %v266, %v312
        %vm686 = vcmp.eq.s32.totalorder %v266, %v316
        %vm687 = vcmp.eq.s32.totalorder %v266, %v320
        %vm688 = vcmp.eq.s32.totalorder %v266, %v324
        %vm689 = vcmp.eq.s32.totalorder %v266, %v328
        %vm690 = vcmp.eq.s32.totalorder %v266, %v332
        %vm691 = vcmp.eq.s32.totalorder %v266, %v336
        %vm692 = vcmp.eq.s32.totalorder %v266, %v340
        %vm693 = vcmp.eq.s32.totalorder %v267, %v280
        %vm694 = vcmp.eq.s32.totalorder %v267, %v284
        %vm695 = vcmp.eq.s32.totalorder %v267, %v288
        %vm696 = vcmp.eq.s32.totalorder %v267, %v292
        %vm697 = vcmp.eq.s32.totalorder %v267, %v296
        %vm698 = vcmp.eq.s32.totalorder %v267, %v300
        %vm699 = vcmp.eq.s32.totalorder %v267, %v304
        %vm700 = vcmp.eq.s32.totalorder %v267, %v308
        %vm701 = vcmp.eq.s32.totalorder %v267, %v312
        %vm702 = vcmp.eq.s32.totalorder %v267, %v316
        %vm703 = vcmp.eq.s32.totalorder %v267, %v320
        %vm704 = vcmp.eq.s32.totalorder %v267, %v324
        %vm705 = vcmp.eq.s32.totalorder %v267, %v328
        %vm706 = vcmp.eq.s32.totalorder %v267, %v332
        %vm707 = vcmp.eq.s32.totalorder %v267, %v336
        %vm708 = vcmp.eq.s32.totalorder %v267, %v340
        %vm709 = vcmp.eq.s32.totalorder %v268, %v280
        %vm710 = vcmp.eq.s32.totalorder %v268, %v284
        %vm711 = vcmp.eq.s32.totalorder %v268, %v288
        %vm712 = vcmp.eq.s32.totalorder %v268, %v292
        %vm713 = vcmp.eq.s32.totalorder %v268, %v296
        %vm714 = vcmp.eq.s32.totalorder %v268, %v300
        %vm715 = vcmp.eq.s32.totalorder %v268, %v304
        %vm716 = vcmp.eq.s32.totalorder %v268, %v308
        %vm717 = vcmp.eq.s32.totalorder %v268, %v312
        %vm718 = vcmp.eq.s32.totalorder %v268, %v316
        %vm719 = vcmp.eq.s32.totalorder %v268, %v320
        %vm720 = vcmp.eq.s32.totalorder %v268, %v324
        %vm721 = vcmp.eq.s32.totalorder %v268, %v328
        %vm722 = vcmp.eq.s32.totalorder %v268, %v332
        %vm723 = vcmp.eq.s32.totalorder %v268, %v336
        %vm724 = vcmp.eq.s32.totalorder %v268, %v340
        %vm725 = vcmp.eq.s32.totalorder %v269, %v280
        %vm726 = vcmp.eq.s32.totalorder %v269, %v284
        %vm727 = vcmp.eq.s32.totalorder %v269, %v288
        %vm728 = vcmp.eq.s32.totalorder %v269, %v292
        %vm729 = vcmp.eq.s32.totalorder %v269, %v296
        %vm730 = vcmp.eq.s32.totalorder %v269, %v300
        %vm731 = vcmp.eq.s32.totalorder %v269, %v304
        %vm732 = vcmp.eq.s32.totalorder %v269, %v308
        %vm733 = vcmp.eq.s32.totalorder %v269, %v312
        %vm734 = vcmp.eq.s32.totalorder %v269, %v316
        %vm735 = vcmp.eq.s32.totalorder %v269, %v320
        %vm736 = vcmp.eq.s32.totalorder %v269, %v324
        %vm737 = vcmp.eq.s32.totalorder %v269, %v328
        %vm738 = vcmp.eq.s32.totalorder %v269, %v332
        %vm739 = vcmp.eq.s32.totalorder %v269, %v336
        %vm740 = vcmp.eq.s32.totalorder %v269, %v340
        %vm741 = vcmp.eq.s32.totalorder %v270, %v280
        %vm742 = vcmp.eq.s32.totalorder %v270, %v284
        %vm743 = vcmp.eq.s32.totalorder %v270, %v288
        %vm744 = vcmp.eq.s32.totalorder %v270, %v292
        %vm745 = vcmp.eq.s32.totalorder %v270, %v296
        %vm746 = vcmp.eq.s32.totalorder %v270, %v300
        %vm747 = vcmp.eq.s32.totalorder %v270, %v304
        %vm748 = vcmp.eq.s32.totalorder %v270, %v308
        %vm749 = vcmp.eq.s32.totalorder %v270, %v312
        %vm750 = vcmp.eq.s32.totalorder %v270, %v316
        %vm751 = vcmp.eq.s32.totalorder %v270, %v320
        %vm752 = vcmp.eq.s32.totalorder %v270, %v324
        %vm753 = vcmp.eq.s32.totalorder %v270, %v328
        %vm754 = vcmp.eq.s32.totalorder %v270, %v332
        %vm755 = vcmp.eq.s32.totalorder %v270, %v336
        %vm756 = vcmp.eq.s32.totalorder %v270, %v340
        %vm757 = vcmp.eq.s32.totalorder %v271, %v280
        %vm758 = vcmp.eq.s32.totalorder %v271, %v284
        %vm759 = vcmp.eq.s32.totalorder %v271, %v288
        %vm760 = vcmp.eq.s32.totalorder %v271, %v292
        %vm761 = vcmp.eq.s32.totalorder %v271, %v296
        %vm762 = vcmp.eq.s32.totalorder %v271, %v300
        %vm763 = vcmp.eq.s32.totalorder %v271, %v304
        %vm764 = vcmp.eq.s32.totalorder %v271, %v308
        %vm765 = vcmp.eq.s32.totalorder %v271, %v312
        %vm766 = vcmp.eq.s32.totalorder %v271, %v316
        %vm767 = vcmp.eq.s32.totalorder %v271, %v320
        %vm768 = vcmp.eq.s32.totalorder %v271, %v324
        %vm769 = vcmp.eq.s32.totalorder %v271, %v328
        %vm770 = vcmp.eq.s32.totalorder %v271, %v332
        %vm771 = vcmp.eq.s32.totalorder %v271, %v336
        %vm772 = vcmp.eq.s32.totalorder %v271, %v340
        %vm773 = vcmp.eq.s32.totalorder %v272, %v280
        %vm774 = vcmp.eq.s32.totalorder %v272, %v284
        %vm775 = vcmp.eq.s32.totalorder %v272, %v288
        %vm776 = vcmp.eq.s32.totalorder %v272, %v292
        %vm777 = vcmp.eq.s32.totalorder %v272, %v296
        %vm778 = vcmp.eq.s32.totalorder %v272, %v300
        %vm779 = vcmp.eq.s32.totalorder %v272, %v304
        %vm780 = vcmp.eq.s32.totalorder %v272, %v308
        %vm781 = vcmp.eq.s32.totalorder %v272, %v312
        %vm782 = vcmp.eq.s32.totalorder %v272, %v316
        %vm783 = vcmp.eq.s32.totalorder %v272, %v320
        %vm784 = vcmp.eq.s32.totalorder %v272, %v324
        %vm785 = vcmp.eq.s32.totalorder %v272, %v328
        %vm786 = vcmp.eq.s32.totalorder %v272, %v332
        %vm787 = vcmp.eq.s32.totalorder %v272, %v336
        %vm788 = vcmp.eq.s32.totalorder %v272, %v340
        %vm789 = vcmp.eq.s32.totalorder %v273, %v280
        %vm790 = vcmp.eq.s32.totalorder %v273, %v284
        %vm791 = vcmp.eq.s32.totalorder %v273, %v288
        %vm792 = vcmp.eq.s32.totalorder %v273, %v292
        %vm793 = vcmp.eq.s32.totalorder %v273, %v296
        %vm794 = vcmp.eq.s32.totalorder %v273, %v300
        %vm795 = vcmp.eq.s32.totalorder %v273, %v304
        %vm796 = vcmp.eq.s32.totalorder %v273, %v308
        %vm797 = vcmp.eq.s32.totalorder %v273, %v312
        %vm798 = vcmp.eq.s32.totalorder %v273, %v316
        %vm799 = vcmp.eq.s32.totalorder %v273, %v320
        %vm800 = vcmp.eq.s32.totalorder %v273, %v324
        %vm801 = vcmp.eq.s32.totalorder %v273, %v328
        %vm802 = vcmp.eq.s32.totalorder %v273, %v332
        %vm803 = vcmp.eq.s32.totalorder %v273, %v336
        %vm804 = vcmp.eq.s32.totalorder %v273, %v340
        %vm805 = vcmp.eq.s32.totalorder %v274, %v280
        %vm806 = vcmp.eq.s32.totalorder %v274, %v284
        %vm807 = vcmp.eq.s32.totalorder %v274, %v288
        %vm808 = vcmp.eq.s32.totalorder %v274, %v292
        %vm809 = vcmp.eq.s32.totalorder %v274, %v296
        %vm810 = vcmp.eq.s32.totalorder %v274, %v300
        %vm811 = vcmp.eq.s32.totalorder %v274, %v304
        %vm812 = vcmp.eq.s32.totalorder %v274, %v308
        %vm813 = vcmp.eq.s32.totalorder %v274, %v312
        %vm814 = vcmp.eq.s32.totalorder %v274, %v316
        %vm815 = vcmp.eq.s32.totalorder %v274, %v320
        %vm816 = vcmp.eq.s32.totalorder %v274, %v324
        %vm817 = vcmp.eq.s32.totalorder %v274, %v328
        %vm818 = vcmp.eq.s32.totalorder %v274, %v332
        %vm819 = vcmp.eq.s32.totalorder %v274, %v336
        %vm820 = vcmp.eq.s32.totalorder %v274, %v340
        %vm821 = vcmp.eq.s32.totalorder %v275, %v280
        %vm822 = vcmp.eq.s32.totalorder %v275, %v284
        %vm823 = vcmp.eq.s32.totalorder %v275, %v288
        %vm824 = vcmp.eq.s32.totalorder %v275, %v292
        %vm825 = vcmp.eq.s32.totalorder %v275, %v296
        %vm826 = vcmp.eq.s32.totalorder %v275, %v300
        %vm827 = vcmp.eq.s32.totalorder %v275, %v304
        %vm828 = vcmp.eq.s32.totalorder %v275, %v308
        %vm829 = vcmp.eq.s32.totalorder %v275, %v312
        %vm830 = vcmp.eq.s32.totalorder %v275, %v316
        %vm831 = vcmp.eq.s32.totalorder %v275, %v320
        %vm832 = vcmp.eq.s32.totalorder %v275, %v324
        %vm833 = vcmp.eq.s32.totalorder %v275, %v328
        %vm834 = vcmp.eq.s32.totalorder %v275, %v332
        %vm835 = vcmp.eq.s32.totalorder %v275, %v336
        %vm836 = vcmp.eq.s32.totalorder %v275, %v340
        %vm837 = vcmp.eq.s32.totalorder %v276, %v280
        %vm838 = vcmp.eq.s32.totalorder %v276, %v284
        %vm839 = vcmp.eq.s32.totalorder %v276, %v288
        %vm840 = vcmp.eq.s32.totalorder %v276, %v292
        %vm841 = vcmp.eq.s32.totalorder %v276, %v296
        %vm842 = vcmp.eq.s32.totalorder %v276, %v300
        %vm843 = vcmp.eq.s32.totalorder %v276, %v304
        %vm844 = vcmp.eq.s32.totalorder %v276, %v308
        %vm845 = vcmp.eq.s32.totalorder %v276, %v312
        %vm846 = vcmp.eq.s32.totalorder %v276, %v316
        %vm847 = vcmp.eq.s32.totalorder %v276, %v320
        %vm848 = vcmp.eq.s32.totalorder %v276, %v324
        %vm849 = vcmp.eq.s32.totalorder %v276, %v328
        %vm850 = vcmp.eq.s32.totalorder %v276, %v332
        %vm851 = vcmp.eq.s32.totalorder %v276, %v336
        %vm852 = vcmp.eq.s32.totalorder %v276, %v340
        %v853 = vsel %vm341, 1, 0
        %v854 = vsel %vm342, 1, 0
        %v855 = vsel %vm343, 1, 0
        %v856 = vsel %vm344, 1, 0
        %v857 = vsel %vm345, 1, 0
        %v858 = vsel %vm346, 1, 0
        %v859 = vsel %vm347, 1, 0
        %v860 = vsel %vm348, 1, 0
        %v861 = vsel %vm349, 1, 0
        %v862 = vsel %vm350, 1, 0
        %v863 = vsel %vm351, 1, 0
        %v864 = vsel %vm352, 1, 0
        %v865 = vsel %vm353, 1, 0
        %v866 = vsel %vm354, 1, 0
        %v867 = vsel %vm355, 1, 0
        %v868 = vsel %vm356, 1, 0
        %v869 = vsel %vm357, 1, 0
        %v870 = vsel %vm358, 1, 0
        %v871 = vsel %vm359, 1, 0
        %v872 = vsel %vm360, 1, 0
        %v873 = vsel %vm361, 1, 0
        %v874 = vsel %vm362, 1, 0
        %v875 = vsel %vm363, 1, 0
        %v876 = vsel %vm364, 1, 0
        %v877 = vsel %vm365, 1, 0
        %v878 = vsel %vm366, 1, 0
        %v879 = vsel %vm367, 1, 0
        %v880 = vsel %vm368, 1, 0
        %v881 = vsel %vm369, 1, 0
        %v882 = vsel %vm370, 1, 0
        %v883 = vsel %vm371, 1, 0
        %v884 = vsel %vm372, 1, 0
        %v885 = vsel %vm373, 1, 0
        %v886 = vsel %vm374, 1, 0
        %v887 = vsel %vm375, 1, 0
        %v888 = vsel %vm376, 1, 0
        %v889 = vsel %vm377, 1, 0
        %v890 = vsel %vm378, 1, 0
        %v891 = vsel %vm379, 1, 0
        %v892 = vsel %vm380, 1, 0
        %v893 = vsel %vm381, 1, 0
        %v894 = vsel %vm382, 1, 0
        %v895 = vsel %vm383, 1, 0
        %v896 = vsel %vm384, 1, 0
        %v897 = vsel %vm385, 1, 0
        %v898 = vsel %vm386, 1, 0
        %v899 = vsel %vm387, 1, 0
        %v900 = vsel %vm388, 1, 0
        %v901 = vsel %vm389, 1, 0
        %v902 = vsel %vm390, 1, 0
        %v903 = vsel %vm391, 1, 0
        %v904 = vsel %vm392, 1, 0
        %v905 = vsel %vm393, 1, 0
        %v906 = vsel %vm394, 1, 0
        %v907 = vsel %vm395, 1, 0
        %v908 = vsel %vm396, 1, 0
        %v909 = vsel %vm397, 1, 0
        %v910 = vsel %vm398, 1, 0
        %v911 = vsel %vm399, 1, 0
        %v912 = vsel %vm400, 1, 0
        %v913 = vsel %vm401, 1, 0
        %v914 = vsel %vm402, 1, 0
        %v915 = vsel %vm403, 1, 0
        %v916 = vsel %vm404, 1, 0
        %v917 = vsel %vm405, 1, 0
        %v918 = vsel %vm406, 1, 0
        %v919 = vsel %vm407, 1, 0
        %v920 = vsel %vm408, 1, 0
        %v921 = vsel %vm409, 1, 0
        %v922 = vsel %vm410, 1, 0
        %v923 = vsel %vm411, 1, 0
        %v924 = vsel %vm412, 1, 0
        %v925 = vsel %vm413, 1, 0
        %v926 = vsel %vm414, 1, 0
        %v927 = vsel %vm415, 1, 0
        %v928 = vsel %vm416, 1, 0
        %v929 = vsel %vm417, 1, 0
        %v930 = vsel %vm418, 1, 0
        %v931 = vsel %vm419, 1, 0
        %v932 = vsel %vm420, 1, 0
        %v933 = vsel %vm421, 1, 0
        %v934 = vsel %vm422, 1, 0
        %v935 = vsel %vm423, 1, 0
        %v936 = vsel %vm424, 1, 0
        %v937 = vsel %vm425, 1, 0
        %v938 = vsel %vm426, 1, 0
        %v939 = vsel %vm427, 1, 0
        %v940 = vsel %vm428, 1, 0
        %v941 = vsel %vm429, 1, 0
        %v942 = vsel %vm430, 1, 0
        %v943 = vsel %vm431, 1, 0
        %v944 = vsel %vm432, 1, 0
        %v945 = vsel %vm433, 1, 0
        %v946 = vsel %vm434, 1, 0
        %v947 = vsel %vm435, 1, 0
        %v948 = vsel %vm436, 1, 0
        %v949 = vsel %vm437, 1, 0
        %v950 = vsel %vm438, 1, 0
        %v951 = vsel %vm439, 1, 0
        %v952 = vsel %vm440, 1, 0
        %v953 = vsel %vm441, 1, 0
        %v954 = vsel %vm442, 1, 0
        %v955 = vsel %vm443, 1, 0
        %v956 = vsel %vm444, 1, 0
        %v957 = vsel %vm445, 1, 0
        %v958 = vsel %vm446, 1, 0
        %v959 = vsel %vm447, 1, 0
        %v960 = vsel %vm448, 1, 0
        %v961 = vsel %vm449, 1, 0
        %v962 = vsel %vm450, 1, 0
        %v963 = vsel %vm451, 1, 0
        %v964 = vsel %vm452, 1, 0
        %v965 = vsel %vm453, 1, 0
        %v966 = vsel %vm454, 1, 0
        %v967 = vsel %vm455, 1, 0
        %v968 = vsel %vm456, 1, 0
        %v969 = vsel %vm457, 1, 0
        %v970 = vsel %vm458, 1, 0
        %v971 = vsel %vm459, 1, 0
        %v972 = vsel %vm460, 1, 0
        %v973 = vsel %vm461, 1, 0
        %v974 = vsel %vm462, 1, 0
        %v975 = vsel %vm463, 1, 0
        %v976 = vsel %vm464, 1, 0
        %v977 = vsel %vm465, 1, 0
        %v978 = vsel %vm466, 1, 0
        %v979 = vsel %vm467, 1, 0
        %v980 = vsel %vm468, 1, 0
        %v981 = vsel %vm469, 1, 0
        %v982 = vsel %vm470, 1, 0
        %v983 = vsel %vm471, 1, 0
        %v984 = vsel %vm472, 1, 0
        %v985 = vsel %vm473, 1, 0
        %v986 = vsel %vm474, 1, 0
        %v987 = vsel %vm475, 1, 0
        %v988 = vsel %vm476, 1, 0
        %v989 = vsel %vm477, 1, 0
        %v990 = vsel %vm478, 1, 0
        %v991 = vsel %vm479, 1, 0
        %v992 = vsel %vm480, 1, 0
        %v993 = vsel %vm481, 1, 0
        %v994 = vsel %vm482, 1, 0
        %v995 = vsel %vm483, 1, 0
        %v996 = vsel %vm484, 1, 0
        %v997 = vsel %vm485, 1, 0
        %v998 = vsel %vm486, 1, 0
        %v999 = vsel %vm487, 1, 0
        %v1000 = vsel %vm488, 1, 0
        %v1001 = vsel %vm489, 1, 0
        %v1002 = vsel %vm490, 1, 0
        %v1003 = vsel %vm491, 1, 0
        %v1004 = vsel %vm492, 1, 0
        %v1005 = vsel %vm493, 1, 0
        %v1006 = vsel %vm494, 1, 0
        %v1007 = vsel %vm495, 1, 0
        %v1008 = vsel %vm496, 1, 0
        %v1009 = vsel %vm497, 1, 0
        %v1010 = vsel %vm498, 1, 0
        %v1011 = vsel %vm499, 1, 0
        %v1012 = vsel %vm500, 1, 0
        %v1013 = vsel %vm501, 1, 0
        %v1014 = vsel %vm502, 1, 0
        %v1015 = vsel %vm503, 1, 0
        %v1016 = vsel %vm504, 1, 0
        %v1017 = vsel %vm505, 1, 0
        %v1018 = vsel %vm506, 1, 0
        %v1019 = vsel %vm507, 1, 0
        %v1020 = vsel %vm508, 1, 0
        %v1021 = vsel %vm509, 1, 0
        %v1022 = vsel %vm510, 1, 0
        %v1023 = vsel %vm511, 1, 0
        %v1024 = vsel %vm512, 1, 0
        %v1025 = vsel %vm513, 1, 0
        %v1026 = vsel %vm514, 1, 0
        %v1027 = vsel %vm515, 1, 0
        %v1028 = vsel %vm516, 1, 0
        %v1029 = vsel %vm517, 1, 0
        %v1030 = vsel %vm518, 1, 0
        %v1031 = vsel %vm519, 1, 0
        %v1032 = vsel %vm520, 1, 0
        %v1033 = vsel %vm521, 1, 0
        %v1034 = vsel %vm522, 1, 0
        %v1035 = vsel %vm523, 1, 0
        %v1036 = vsel %vm524, 1, 0
        %v1037 = vsel %vm525, 1, 0
        %v1038 = vsel %vm526, 1, 0
        %v1039 = vsel %vm527, 1, 0
        %v1040 = vsel %vm528, 1, 0
        %v1041 = vsel %vm529, 1, 0
        %v1042 = vsel %vm530, 1, 0
        %v1043 = vsel %vm531, 1, 0
        %v1044 = vsel %vm532, 1, 0
        %v1045 = vsel %vm533, 1, 0
        %v1046 = vsel %vm534, 1, 0
        %v1047 = vsel %vm535, 1, 0
        %v1048 = vsel %vm536, 1, 0
        %v1049 = vsel %vm537, 1, 0
        %v1050 = vsel %vm538, 1, 0
        %v1051 = vsel %vm539, 1, 0
        %v1052 = vsel %vm540, 1, 0
        %v1053 = vsel %vm541, 1, 0
        %v1054 = vsel %vm542, 1, 0
        %v1055 = vsel %vm543, 1, 0
        %v1056 = vsel %vm544, 1, 0
        %v1057 = vsel %vm545, 1, 0
        %v1058 = vsel %vm546, 1, 0
        %v1059 = vsel %vm547, 1, 0
        %v1060 = vsel %vm548, 1, 0
        %v1061 = vsel %vm549, 1, 0
        %v1062 = vsel %vm550, 1, 0
        %v1063 = vsel %vm551, 1, 0
        %v1064 = vsel %vm552, 1, 0
        %v1065 = vsel %vm553, 1, 0
        %v1066 = vsel %vm554, 1, 0
        %v1067 = vsel %vm555, 1, 0
        %v1068 = vsel %vm556, 1, 0
        %v1069 = vsel %vm557, 1, 0
        %v1070 = vsel %vm558, 1, 0
        %v1071 = vsel %vm559, 1, 0
        %v1072 = vsel %vm560, 1, 0
        %v1073 = vsel %vm561, 1, 0
        %v1074 = vsel %vm562, 1, 0
        %v1075 = vsel %vm563, 1, 0
        %v1076 = vsel %vm564, 1, 0
        %v1077 = vsel %vm565, 1, 0
        %v1078 = vsel %vm566, 1, 0
        %v1079 = vsel %vm567, 1, 0
        %v1080 = vsel %vm568, 1, 0
        %v1081 = vsel %vm569, 1, 0
        %v1082 = vsel %vm570, 1, 0
        %v1083 = vsel %vm571, 1, 0
        %v1084 = vsel %vm572, 1, 0
        %v1085 = vsel %vm573, 1, 0
        %v1086 = vsel %vm574, 1, 0
        %v1087 = vsel %vm575, 1, 0
        %v1088 = vsel %vm576, 1, 0
        %v1089 = vsel %vm577, 1, 0
        %v1090 = vsel %vm578, 1, 0
        %v1091 = vsel %vm579, 1, 0
        %v1092 = vsel %vm580, 1, 0
        %v1093 = vsel %vm581, 1, 0
        %v1094 = vsel %vm582, 1, 0
        %v1095 = vsel %vm583, 1, 0
        %v1096 = vsel %vm584, 1, 0
        %v1097 = vsel %vm585, 1, 0
        %v1098 = vsel %vm586, 1, 0
        %v1099 = vsel %vm587, 1, 0
        %v1100 = vsel %vm588, 1, 0
        %v1101 = vsel %vm589, 1, 0
        %v1102 = vsel %vm590, 1, 0
        %v1103 = vsel %vm591, 1, 0
        %v1104 = vsel %vm592, 1, 0
        %v1105 = vsel %vm593, 1, 0
        %v1106 = vsel %vm594, 1, 0
        %v1107 = vsel %vm595, 1, 0
        %v1108 = vsel %vm596, 1, 0
        %v1109 = vsel %vm597, 1, 0
        %v1110 = vsel %vm598, 1, 0
        %v1111 = vsel %vm599, 1, 0
        %v1112 = vsel %vm600, 1, 0
        %v1113 = vsel %vm601, 1, 0
        %v1114 = vsel %vm602, 1, 0
        %v1115 = vsel %vm603, 1, 0
        %v1116 = vsel %vm604, 1, 0
        %v1117 = vsel %vm605, 1, 0
        %v1118 = vsel %vm606, 1, 0
        %v1119 = vsel %vm607, 1, 0
        %v1120 = vsel %vm608, 1, 0
        %v1121 = vsel %vm609, 1, 0
        %v1122 = vsel %vm610, 1, 0
        %v1123 = vsel %vm611, 1, 0
        %v1124 = vsel %vm612, 1, 0
        %v1125 = vsel %vm613, 1, 0
        %v1126 = vsel %vm614, 1, 0
        %v1127 = vsel %vm615, 1, 0
        %v1128 = vsel %vm616, 1, 0
        %v1129 = vsel %vm617, 1, 0
        %v1130 = vsel %vm618, 1, 0
        %v1131 = vsel %vm619, 1, 0
        %v1132 = vsel %vm620, 1, 0
        %v1133 = vsel %vm621, 1, 0
        %v1134 = vsel %vm622, 1, 0
        %v1135 = vsel %vm623, 1, 0
        %v1136 = vsel %vm624, 1, 0
        %v1137 = vsel %vm625, 1, 0
        %v1138 = vsel %vm626, 1, 0
        %v1139 = vsel %vm627, 1, 0
        %v1140 = vsel %vm628, 1, 0
        %v1141 = vsel %vm629, 1, 0
        %v1142 = vsel %vm630, 1, 0
        %v1143 = vsel %vm631, 1, 0
        %v1144 = vsel %vm632, 1, 0
        %v1145 = vsel %vm633, 1, 0
        %v1146 = vsel %vm634, 1, 0
        %v1147 = vsel %vm635, 1, 0
        %v1148 = vsel %vm636, 1, 0
        %v1149 = vsel %vm637, 1, 0
        %v1150 = vsel %vm638, 1, 0
        %v1151 = vsel %vm639, 1, 0
        %v1152 = vsel %vm640, 1, 0
        %v1153 = vsel %vm641, 1, 0
        %v1154 = vsel %vm642, 1, 0
        %v1155 = vsel %vm643, 1, 0
        %v1156 = vsel %vm644, 1, 0
        %v1157 = vsel %vm645, 1, 0
        %v1158 = vsel %vm646, 1, 0
        %v1159 = vsel %vm647, 1, 0
        %v1160 = vsel %vm648, 1, 0
        %v1161 = vsel %vm649, 1, 0
        %v1162 = vsel %vm650, 1, 0
        %v1163 = vsel %vm651, 1, 0
        %v1164 = vsel %vm652, 1, 0
        %v1165 = vsel %vm653, 1, 0
        %v1166 = vsel %vm654, 1, 0
        %v1167 = vsel %vm655, 1, 0
        %v1168 = vsel %vm656, 1, 0
        %v1169 = vsel %vm657, 1, 0
        %v1170 = vsel %vm658, 1, 0
        %v1171 = vsel %vm659, 1, 0
        %v1172 = vsel %vm660, 1, 0
        %v1173 = vsel %vm661, 1, 0
        %v1174 = vsel %vm662, 1, 0
        %v1175 = vsel %vm663, 1, 0
        %v1176 = vsel %vm664, 1, 0
        %v1177 = vsel %vm665, 1, 0
        %v1178 = vsel %vm666, 1, 0
        %v1179 = vsel %vm667, 1, 0
        %v1180 = vsel %vm668, 1, 0
        %v1181 = vsel %vm669, 1, 0
        %v1182 = vsel %vm670, 1, 0
        %v1183 = vsel %vm671, 1, 0
        %v1184 = vsel %vm672, 1, 0
        %v1185 = vsel %vm673, 1, 0
        %v1186 = vsel %vm674, 1, 0
        %v1187 = vsel %vm675, 1, 0
        %v1188 = vsel %vm676, 1, 0
        %v1189 = vsel %vm677, 1, 0
        %v1190 = vsel %vm678, 1, 0
        %v1191 = vsel %vm679, 1, 0
        %v1192 = vsel %vm680, 1, 0
        %v1193 = vsel %vm681, 1, 0
        %v1194 = vsel %vm682, 1, 0
        %v1195 = vsel %vm683, 1, 0
        %v1196 = vsel %vm684, 1, 0
        %v1197 = vsel %vm685, 1, 0
        %v1198 = vsel %vm686, 1, 0
        %v1199 = vsel %vm687, 1, 0
        %v1200 = vsel %vm688, 1, 0
        %v1201 = vsel %vm689, 1, 0
        %v1202 = vsel %vm690, 1, 0
        %v1203 = vsel %vm691, 1, 0
        %v1204 = vsel %vm692, 1, 0
        %v1205 = vsel %vm693, 1, 0
        %v1206 = vsel %vm694, 1, 0
        %v1207 = vsel %vm695, 1, 0
        %v1208 = vsel %vm696, 1, 0
        %v1209 = vsel %vm697, 1, 0
        %v1210 = vsel %vm698, 1, 0
        %v1211 = vsel %vm699, 1, 0
        %v1212 = vsel %vm700, 1, 0
        %v1213 = vsel %vm701, 1, 0
        %v1214 = vsel %vm702, 1, 0
        %v1215 = vsel %vm703, 1, 0
        %v1216 = vsel %vm704, 1, 0
        %v1217 = vsel %vm705, 1, 0
        %v1218 = vsel %vm706, 1, 0
        %v1219 = vsel %vm707, 1, 0
        %v1220 = vsel %vm708, 1, 0
        %v1221 = vsel %vm709, 1, 0
        %v1222 = vsel %vm710, 1, 0
        %v1223 = vsel %vm711, 1, 0
        %v1224 = vsel %vm712, 1, 0
        %v1225 = vsel %vm713, 1, 0
        %v1226 = vsel %vm714, 1, 0
        %v1227 = vsel %vm715, 1, 0
        %v1228 = vsel %vm716, 1, 0
        %v1229 = vsel %vm717, 1, 0
        %v1230 = vsel %vm718, 1, 0
        %v1231 = vsel %vm719, 1, 0
        %v1232 = vsel %vm720, 1, 0
        %v1233 = vsel %vm721, 1, 0
        %v1234 = vsel %vm722, 1, 0
        %v1235 = vsel %vm723, 1, 0
        %v1236 = vsel %vm724, 1, 0
        %v1237 = vsel %vm725, 1, 0
        %v1238 = vsel %vm726, 1, 0
        %v1239 = vsel %vm727, 1, 0
        %v1240 = vsel %vm728, 1, 0
        %v1241 = vsel %vm729, 1, 0
        %v1242 = vsel %vm730, 1, 0
        %v1243 = vsel %vm731, 1, 0
        %v1244 = vsel %vm732, 1, 0
        %v1245 = vsel %vm733, 1, 0
        %v1246 = vsel %vm734, 1, 0
        %v1247 = vsel %vm735, 1, 0
        %v1248 = vsel %vm736, 1, 0
        %v1249 = vsel %vm737, 1, 0
        %v1250 = vsel %vm738, 1, 0
        %v1251 = vsel %vm739, 1, 0
        %v1252 = vsel %vm740, 1, 0
        %v1253 = vsel %vm741, 1, 0
        %v1254 = vsel %vm742, 1, 0
        %v1255 = vsel %vm743, 1, 0
        %v1256 = vsel %vm744, 1, 0
        %v1257 = vsel %vm745, 1, 0
        %v1258 = vsel %vm746, 1, 0
        %v1259 = vsel %vm747, 1, 0
        %v1260 = vsel %vm748, 1, 0
        %v1261 = vsel %vm749, 1, 0
        %v1262 = vsel %vm750, 1, 0
        %v1263 = vsel %vm751, 1, 0
        %v1264 = vsel %vm752, 1, 0
        %v1265 = vsel %vm753, 1, 0
        %v1266 = vsel %vm754, 1, 0
        %v1267 = vsel %vm755, 1, 0
        %v1268 = vsel %vm756, 1, 0
        %v1269 = vsel %vm757, 1, 0
        %v1270 = vsel %vm758, 1, 0
        %v1271 = vsel %vm759, 1, 0
        %v1272 = vsel %vm760, 1, 0
        %v1273 = vsel %vm761, 1, 0
        %v1274 = vsel %vm762, 1, 0
        %v1275 = vsel %vm763, 1, 0
        %v1276 = vsel %vm764, 1, 0
        %v1277 = vsel %vm765, 1, 0
        %v1278 = vsel %vm766, 1, 0
        %v1279 = vsel %vm767, 1, 0
        %v1280 = vsel %vm768, 1, 0
        %v1281 = vsel %vm769, 1, 0
        %v1282 = vsel %vm770, 1, 0
        %v1283 = vsel %vm771, 1, 0
        %v1284 = vsel %vm772, 1, 0
        %v1285 = vsel %vm773, 1, 0
        %v1286 = vsel %vm774, 1, 0
        %v1287 = vsel %vm775, 1, 0
        %v1288 = vsel %vm776, 1, 0
        %v1289 = vsel %vm777, 1, 0
        %v1290 = vsel %vm778, 1, 0
        %v1291 = vsel %vm779, 1, 0
        %v1292 = vsel %vm780, 1, 0
        %v1293 = vsel %vm781, 1, 0
        %v1294 = vsel %vm782, 1, 0
        %v1295 = vsel %vm783, 1, 0
        %v1296 = vsel %vm784, 1, 0
        %v1297 = vsel %vm785, 1, 0
        %v1298 = vsel %vm786, 1, 0
        %v1299 = vsel %vm787, 1, 0
        %v1300 = vsel %vm788, 1, 0
        %v1301 = vsel %vm789, 1, 0
        %v1302 = vsel %vm790, 1, 0
        %v1303 = vsel %vm791, 1, 0
        %v1304 = vsel %vm792, 1, 0
        %v1305 = vsel %vm793, 1, 0
        %v1306 = vsel %vm794, 1, 0
        %v1307 = vsel %vm795, 1, 0
        %v1308 = vsel %vm796, 1, 0
        %v1309 = vsel %vm797, 1, 0
        %v1310 = vsel %vm798, 1, 0
        %v1311 = vsel %vm799, 1, 0
        %v1312 = vsel %vm800, 1, 0
        %v1313 = vsel %vm801, 1, 0
        %v1314 = vsel %vm802, 1, 0
        %v1315 = vsel %vm803, 1, 0
        %v1316 = vsel %vm804, 1, 0
        %v1317 = vsel %vm805, 1, 0
        %v1318 = vsel %vm806, 1, 0
        %v1319 = vsel %vm807, 1, 0
        %v1320 = vsel %vm808, 1, 0
        %v1321 = vsel %vm809, 1, 0
        %v1322 = vsel %vm810, 1, 0
        %v1323 = vsel %vm811, 1, 0
        %v1324 = vsel %vm812, 1, 0
        %v1325 = vsel %vm813, 1, 0
        %v1326 = vsel %vm814, 1, 0
        %v1327 = vsel %vm815, 1, 0
        %v1328 = vsel %vm816, 1, 0
        %v1329 = vsel %vm817, 1, 0
        %v1330 = vsel %vm818, 1, 0
        %v1331 = vsel %vm819, 1, 0
        %v1332 = vsel %vm820, 1, 0
        %v1333 = vsel %vm821, 1, 0
        %v1334 = vsel %vm822, 1, 0
        %v1335 = vsel %vm823, 1, 0
        %v1336 = vsel %vm824, 1, 0
        %v1337 = vsel %vm825, 1, 0
        %v1338 = vsel %vm826, 1, 0
        %v1339 = vsel %vm827, 1, 0
        %v1340 = vsel %vm828, 1, 0
        %v1341 = vsel %vm829, 1, 0
        %v1342 = vsel %vm830, 1, 0
        %v1343 = vsel %vm831, 1, 0
        %v1344 = vsel %vm832, 1, 0
        %v1345 = vsel %vm833, 1, 0
        %v1346 = vsel %vm834, 1, 0
        %v1347 = vsel %vm835, 1, 0
        %v1348 = vsel %vm836, 1, 0
        %v1349 = vsel %vm837, 1, 0
        %v1350 = vsel %vm838, 1, 0
        %v1351 = vsel %vm839, 1, 0
        %v1352 = vsel %vm840, 1, 0
        %v1353 = vsel %vm841, 1, 0
        %v1354 = vsel %vm842, 1, 0
        %v1355 = vsel %vm843, 1, 0
        %v1356 = vsel %vm844, 1, 0
        %v1357 = vsel %vm845, 1, 0
        %v1358 = vsel %vm846, 1, 0
        %v1359 = vsel %vm847, 1, 0
        %v1360 = vsel %vm848, 1, 0
        %v1361 = vsel %vm849, 1, 0
        %v1362 = vsel %vm850, 1, 0
        %v1363 = vsel %vm851, 1, 0
        %v1364 = vsel %vm852, 1, 0
        %v1365 = vcvt.s32.f32 %v853
        %v1366 = vcvt.s32.f32 %v854
        %v1367 = vcvt.s32.f32 %v855
        %v1368 = vcvt.s32.f32 %v856
        %v1369 = vcvt.s32.f32 %v857
        %v1370 = vcvt.s32.f32 %v858
        %v1371 = vcvt.s32.f32 %v859
        %v1372 = vcvt.s32.f32 %v860
        %v1373 = vcvt.s32.f32 %v861
        %v1374 = vcvt.s32.f32 %v862
        %v1375 = vcvt.s32.f32 %v863
        %v1376 = vcvt.s32.f32 %v864
        %v1377 = vcvt.s32.f32 %v865
        %v1378 = vcvt.s32.f32 %v866
        %v1379 = vcvt.s32.f32 %v867
        %v1380 = vcvt.s32.f32 %v868
        %v1381 = vcvt.s32.f32 %v869
        %v1382 = vcvt.s32.f32 %v870
        %v1383 = vcvt.s32.f32 %v871
        %v1384 = vcvt.s32.f32 %v872
        %v1385 = vcvt.s32.f32 %v873
        %v1386 = vcvt.s32.f32 %v874
        %v1387 = vcvt.s32.f32 %v875
        %v1388 = vcvt.s32.f32 %v876
        %v1389 = vcvt.s32.f32 %v877
        %v1390 = vcvt.s32.f32 %v878
        %v1391 = vcvt.s32.f32 %v879
        %v1392 = vcvt.s32.f32 %v880
        %v1393 = vcvt.s32.f32 %v881
        %v1394 = vcvt.s32.f32 %v882
        %v1395 = vcvt.s32.f32 %v883
        %v1396 = vcvt.s32.f32 %v884
        %v1397 = vcvt.s32.f32 %v885
        %v1398 = vcvt.s32.f32 %v886
        %v1399 = vcvt.s32.f32 %v887
        %v1400 = vcvt.s32.f32 %v888
        %v1401 = vcvt.s32.f32 %v889
        %v1402 = vcvt.s32.f32 %v890
        %v1403 = vcvt.s32.f32 %v891
        %v1404 = vcvt.s32.f32 %v892
        %v1405 = vcvt.s32.f32 %v893
        %v1406 = vcvt.s32.f32 %v894
        %v1407 = vcvt.s32.f32 %v895
        %v1408 = vcvt.s32.f32 %v896
        %v1409 = vcvt.s32.f32 %v897
        %v1410 = vcvt.s32.f32 %v898
        %v1411 = vcvt.s32.f32 %v899
        %v1412 = vcvt.s32.f32 %v900
        %v1413 = vcvt.s32.f32 %v901
        %v1414 = vcvt.s32.f32 %v902
        %v1415 = vcvt.s32.f32 %v903
        %v1416 = vcvt.s32.f32 %v904
        %v1417 = vcvt.s32.f32 %v905
        %v1418 = vcvt.s32.f32 %v906
        %v1419 = vcvt.s32.f32 %v907
        %v1420 = vcvt.s32.f32 %v908
        %v1421 = vcvt.s32.f32 %v909
        %v1422 = vcvt.s32.f32 %v910
        %v1423 = vcvt.s32.f32 %v911
        %v1424 = vcvt.s32.f32 %v912
        %v1425 = vcvt.s32.f32 %v913
        %v1426 = vcvt.s32.f32 %v914
        %v1427 = vcvt.s32.f32 %v915
        %v1428 = vcvt.s32.f32 %v916
        %v1429 = vcvt.s32.f32 %v917
        %v1430 = vcvt.s32.f32 %v918
        %v1431 = vcvt.s32.f32 %v919
        %v1432 = vcvt.s32.f32 %v920
        %v1433 = vcvt.s32.f32 %v921
        %v1434 = vcvt.s32.f32 %v922
        %v1435 = vcvt.s32.f32 %v923
        %v1436 = vcvt.s32.f32 %v924
        %v1437 = vcvt.s32.f32 %v925
        %v1438 = vcvt.s32.f32 %v926
        %v1439 = vcvt.s32.f32 %v927
        %v1440 = vcvt.s32.f32 %v928
        %v1441 = vcvt.s32.f32 %v929
        %v1442 = vcvt.s32.f32 %v930
        %v1443 = vcvt.s32.f32 %v931
        %v1444 = vcvt.s32.f32 %v932
        %v1445 = vcvt.s32.f32 %v933
        %v1446 = vcvt.s32.f32 %v934
        %v1447 = vcvt.s32.f32 %v935
        %v1448 = vcvt.s32.f32 %v936
        %v1449 = vcvt.s32.f32 %v937
        %v1450 = vcvt.s32.f32 %v938
        %v1451 = vcvt.s32.f32 %v939
        %v1452 = vcvt.s32.f32 %v940
        %v1453 = vcvt.s32.f32 %v941
        %v1454 = vcvt.s32.f32 %v942
        %v1455 = vcvt.s32.f32 %v943
        %v1456 = vcvt.s32.f32 %v944
        %v1457 = vcvt.s32.f32 %v945
        %v1458 = vcvt.s32.f32 %v946
        %v1459 = vcvt.s32.f32 %v947
        %v1460 = vcvt.s32.f32 %v948
        %v1461 = vcvt.s32.f32 %v949
        %v1462 = vcvt.s32.f32 %v950
        %v1463 = vcvt.s32.f32 %v951
        %v1464 = vcvt.s32.f32 %v952
        %v1465 = vcvt.s32.f32 %v953
        %v1466 = vcvt.s32.f32 %v954
        %v1467 = vcvt.s32.f32 %v955
        %v1468 = vcvt.s32.f32 %v956
        %v1469 = vcvt.s32.f32 %v957
        %v1470 = vcvt.s32.f32 %v958
        %v1471 = vcvt.s32.f32 %v959
        %v1472 = vcvt.s32.f32 %v960
        %v1473 = vcvt.s32.f32 %v961
        %v1474 = vcvt.s32.f32 %v962
        %v1475 = vcvt.s32.f32 %v963
        %v1476 = vcvt.s32.f32 %v964
        %v1477 = vcvt.s32.f32 %v965
        %v1478 = vcvt.s32.f32 %v966
        %v1479 = vcvt.s32.f32 %v967
        %v1480 = vcvt.s32.f32 %v968
        %v1481 = vcvt.s32.f32 %v969
        %v1482 = vcvt.s32.f32 %v970
        %v1483 = vcvt.s32.f32 %v971
        %v1484 = vcvt.s32.f32 %v972
        %v1485 = vcvt.s32.f32 %v973
        %v1486 = vcvt.s32.f32 %v974
        %v1487 = vcvt.s32.f32 %v975
        %v1488 = vcvt.s32.f32 %v976
        %v1489 = vcvt.s32.f32 %v977
        %v1490 = vcvt.s32.f32 %v978
        %v1491 = vcvt.s32.f32 %v979
        %v1492 = vcvt.s32.f32 %v980
        %v1493 = vcvt.s32.f32 %v981
        %v1494 = vcvt.s32.f32 %v982
        %v1495 = vcvt.s32.f32 %v983
        %v1496 = vcvt.s32.f32 %v984
        %v1497 = vcvt.s32.f32 %v985
        %v1498 = vcvt.s32.f32 %v986
        %v1499 = vcvt.s32.f32 %v987
        %v1500 = vcvt.s32.f32 %v988
        %v1501 = vcvt.s32.f32 %v989
        %v1502 = vcvt.s32.f32 %v990
        %v1503 = vcvt.s32.f32 %v991
        %v1504 = vcvt.s32.f32 %v992
        %v1505 = vcvt.s32.f32 %v993
        %v1506 = vcvt.s32.f32 %v994
        %v1507 = vcvt.s32.f32 %v995
        %v1508 = vcvt.s32.f32 %v996
        %v1509 = vcvt.s32.f32 %v997
        %v1510 = vcvt.s32.f32 %v998
        %v1511 = vcvt.s32.f32 %v999
        %v1512 = vcvt.s32.f32 %v1000
        %v1513 = vcvt.s32.f32 %v1001
        %v1514 = vcvt.s32.f32 %v1002
        %v1515 = vcvt.s32.f32 %v1003
        %v1516 = vcvt.s32.f32 %v1004
        %v1517 = vcvt.s32.f32 %v1005
        %v1518 = vcvt.s32.f32 %v1006
        %v1519 = vcvt.s32.f32 %v1007
        %v1520 = vcvt.s32.f32 %v1008
        %v1521 = vcvt.s32.f32 %v1009
        %v1522 = vcvt.s32.f32 %v1010
        %v1523 = vcvt.s32.f32 %v1011
        %v1524 = vcvt.s32.f32 %v1012
        %v1525 = vcvt.s32.f32 %v1013
        %v1526 = vcvt.s32.f32 %v1014
        %v1527 = vcvt.s32.f32 %v1015
        %v1528 = vcvt.s32.f32 %v1016
        %v1529 = vcvt.s32.f32 %v1017
        %v1530 = vcvt.s32.f32 %v1018
        %v1531 = vcvt.s32.f32 %v1019
        %v1532 = vcvt.s32.f32 %v1020
        %v1533 = vcvt.s32.f32 %v1021
        %v1534 = vcvt.s32.f32 %v1022
        %v1535 = vcvt.s32.f32 %v1023
        %v1536 = vcvt.s32.f32 %v1024
        %v1537 = vcvt.s32.f32 %v1025
        %v1538 = vcvt.s32.f32 %v1026
        %v1539 = vcvt.s32.f32 %v1027
        %v1540 = vcvt.s32.f32 %v1028
        %v1541 = vcvt.s32.f32 %v1029
        %v1542 = vcvt.s32.f32 %v1030
        %v1543 = vcvt.s32.f32 %v1031
        %v1544 = vcvt.s32.f32 %v1032
        %v1545 = vcvt.s32.f32 %v1033
        %v1546 = vcvt.s32.f32 %v1034
        %v1547 = vcvt.s32.f32 %v1035
        %v1548 = vcvt.s32.f32 %v1036
        %v1549 = vcvt.s32.f32 %v1037
        %v1550 = vcvt.s32.f32 %v1038
        %v1551 = vcvt.s32.f32 %v1039
        %v1552 = vcvt.s32.f32 %v1040
        %v1553 = vcvt.s32.f32 %v1041
        %v1554 = vcvt.s32.f32 %v1042
        %v1555 = vcvt.s32.f32 %v1043
        %v1556 = vcvt.s32.f32 %v1044
        %v1557 = vcvt.s32.f32 %v1045
        %v1558 = vcvt.s32.f32 %v1046
        %v1559 = vcvt.s32.f32 %v1047
        %v1560 = vcvt.s32.f32 %v1048
        %v1561 = vcvt.s32.f32 %v1049
        %v1562 = vcvt.s32.f32 %v1050
        %v1563 = vcvt.s32.f32 %v1051
        %v1564 = vcvt.s32.f32 %v1052
        %v1565 = vcvt.s32.f32 %v1053
        %v1566 = vcvt.s32.f32 %v1054
        %v1567 = vcvt.s32.f32 %v1055
        %v1568 = vcvt.s32.f32 %v1056
        %v1569 = vcvt.s32.f32 %v1057
        %v1570 = vcvt.s32.f32 %v1058
        %v1571 = vcvt.s32.f32 %v1059
        %v1572 = vcvt.s32.f32 %v1060
        %v1573 = vcvt.s32.f32 %v1061
        %v1574 = vcvt.s32.f32 %v1062
        %v1575 = vcvt.s32.f32 %v1063
        %v1576 = vcvt.s32.f32 %v1064
        %v1577 = vcvt.s32.f32 %v1065
        %v1578 = vcvt.s32.f32 %v1066
        %v1579 = vcvt.s32.f32 %v1067
        %v1580 = vcvt.s32.f32 %v1068
        %v1581 = vcvt.s32.f32 %v1069
        %v1582 = vcvt.s32.f32 %v1070
        %v1583 = vcvt.s32.f32 %v1071
        %v1584 = vcvt.s32.f32 %v1072
        %v1585 = vcvt.s32.f32 %v1073
        %v1586 = vcvt.s32.f32 %v1074
        %v1587 = vcvt.s32.f32 %v1075
        %v1588 = vcvt.s32.f32 %v1076
        %v1589 = vcvt.s32.f32 %v1077
        %v1590 = vcvt.s32.f32 %v1078
        %v1591 = vcvt.s32.f32 %v1079
        %v1592 = vcvt.s32.f32 %v1080
        %v1593 = vcvt.s32.f32 %v1081
        %v1594 = vcvt.s32.f32 %v1082
        %v1595 = vcvt.s32.f32 %v1083
        %v1596 = vcvt.s32.f32 %v1084
        %v1597 = vcvt.s32.f32 %v1085
        %v1598 = vcvt.s32.f32 %v1086
        %v1599 = vcvt.s32.f32 %v1087
        %v1600 = vcvt.s32.f32 %v1088
        %v1601 = vcvt.s32.f32 %v1089
        %v1602 = vcvt.s32.f32 %v1090
        %v1603 = vcvt.s32.f32 %v1091
        %v1604 = vcvt.s32.f32 %v1092
        %v1605 = vcvt.s32.f32 %v1093
        %v1606 = vcvt.s32.f32 %v1094
        %v1607 = vcvt.s32.f32 %v1095
        %v1608 = vcvt.s32.f32 %v1096
        %v1609 = vcvt.s32.f32 %v1097
        %v1610 = vcvt.s32.f32 %v1098
        %v1611 = vcvt.s32.f32 %v1099
        %v1612 = vcvt.s32.f32 %v1100
        %v1613 = vcvt.s32.f32 %v1101
        %v1614 = vcvt.s32.f32 %v1102
        %v1615 = vcvt.s32.f32 %v1103
        %v1616 = vcvt.s32.f32 %v1104
        %v1617 = vcvt.s32.f32 %v1105
        %v1618 = vcvt.s32.f32 %v1106
        %v1619 = vcvt.s32.f32 %v1107
        %v1620 = vcvt.s32.f32 %v1108
        %v1621 = vcvt.s32.f32 %v1109
        %v1622 = vcvt.s32.f32 %v1110
        %v1623 = vcvt.s32.f32 %v1111
        %v1624 = vcvt.s32.f32 %v1112
        %v1625 = vcvt.s32.f32 %v1113
        %v1626 = vcvt.s32.f32 %v1114
        %v1627 = vcvt.s32.f32 %v1115
        %v1628 = vcvt.s32.f32 %v1116
        %v1629 = vcvt.s32.f32 %v1117
        %v1630 = vcvt.s32.f32 %v1118
        %v1631 = vcvt.s32.f32 %v1119
        %v1632 = vcvt.s32.f32 %v1120
        %v1633 = vcvt.s32.f32 %v1121
        %v1634 = vcvt.s32.f32 %v1122
        %v1635 = vcvt.s32.f32 %v1123
        %v1636 = vcvt.s32.f32 %v1124
        %v1637 = vcvt.s32.f32 %v1125
        %v1638 = vcvt.s32.f32 %v1126
        %v1639 = vcvt.s32.f32 %v1127
        %v1640 = vcvt.s32.f32 %v1128
        %v1641 = vcvt.s32.f32 %v1129
        %v1642 = vcvt.s32.f32 %v1130
        %v1643 = vcvt.s32.f32 %v1131
        %v1644 = vcvt.s32.f32 %v1132
        %v1645 = vcvt.s32.f32 %v1133
        %v1646 = vcvt.s32.f32 %v1134
        %v1647 = vcvt.s32.f32 %v1135
        %v1648 = vcvt.s32.f32 %v1136
        %v1649 = vcvt.s32.f32 %v1137
        %v1650 = vcvt.s32.f32 %v1138
        %v1651 = vcvt.s32.f32 %v1139
        %v1652 = vcvt.s32.f32 %v1140
        %v1653 = vcvt.s32.f32 %v1141
        %v1654 = vcvt.s32.f32 %v1142
        %v1655 = vcvt.s32.f32 %v1143
        %v1656 = vcvt.s32.f32 %v1144
        %v1657 = vcvt.s32.f32 %v1145
        %v1658 = vcvt.s32.f32 %v1146
        %v1659 = vcvt.s32.f32 %v1147
        %v1660 = vcvt.s32.f32 %v1148
        %v1661 = vcvt.s32.f32 %v1149
        %v1662 = vcvt.s32.f32 %v1150
        %v1663 = vcvt.s32.f32 %v1151
        %v1664 = vcvt.s32.f32 %v1152
        %v1665 = vcvt.s32.f32 %v1153
        %v1666 = vcvt.s32.f32 %v1154
        %v1667 = vcvt.s32.f32 %v1155
        %v1668 = vcvt.s32.f32 %v1156
        %v1669 = vcvt.s32.f32 %v1157
        %v1670 = vcvt.s32.f32 %v1158
        %v1671 = vcvt.s32.f32 %v1159
        %v1672 = vcvt.s32.f32 %v1160
        %v1673 = vcvt.s32.f32 %v1161
        %v1674 = vcvt.s32.f32 %v1162
        %v1675 = vcvt.s32.f32 %v1163
        %v1676 = vcvt.s32.f32 %v1164
        %v1677 = vcvt.s32.f32 %v1165
        %v1678 = vcvt.s32.f32 %v1166
        %v1679 = vcvt.s32.f32 %v1167
        %v1680 = vcvt.s32.f32 %v1168
        %v1681 = vcvt.s32.f32 %v1169
        %v1682 = vcvt.s32.f32 %v1170
        %v1683 = vcvt.s32.f32 %v1171
        %v1684 = vcvt.s32.f32 %v1172
        %v1685 = vcvt.s32.f32 %v1173
        %v1686 = vcvt.s32.f32 %v1174
        %v1687 = vcvt.s32.f32 %v1175
        %v1688 = vcvt.s32.f32 %v1176
        %v1689 = vcvt.s32.f32 %v1177
        %v1690 = vcvt.s32.f32 %v1178
        %v1691 = vcvt.s32.f32 %v1179
        %v1692 = vcvt.s32.f32 %v1180
        %v1693 = vcvt.s32.f32 %v1181
        %v1694 = vcvt.s32.f32 %v1182
        %v1695 = vcvt.s32.f32 %v1183
        %v1696 = vcvt.s32.f32 %v1184
        %v1697 = vcvt.s32.f32 %v1185
        %v1698 = vcvt.s32.f32 %v1186
        %v1699 = vcvt.s32.f32 %v1187
        %v1700 = vcvt.s32.f32 %v1188
        %v1701 = vcvt.s32.f32 %v1189
        %v1702 = vcvt.s32.f32 %v1190
        %v1703 = vcvt.s32.f32 %v1191
        %v1704 = vcvt.s32.f32 %v1192
        %v1705 = vcvt.s32.f32 %v1193
        %v1706 = vcvt.s32.f32 %v1194
        %v1707 = vcvt.s32.f32 %v1195
        %v1708 = vcvt.s32.f32 %v1196
        %v1709 = vcvt.s32.f32 %v1197
        %v1710 = vcvt.s32.f32 %v1198
        %v1711 = vcvt.s32.f32 %v1199
        %v1712 = vcvt.s32.f32 %v1200
        %v1713 = vcvt.s32.f32 %v1201
        %v1714 = vcvt.s32.f32 %v1202
        %v1715 = vcvt.s32.f32 %v1203
        %v1716 = vcvt.s32.f32 %v1204
        %v1717 = vcvt.s32.f32 %v1205
        %v1718 = vcvt.s32.f32 %v1206
        %v1719 = vcvt.s32.f32 %v1207
        %v1720 = vcvt.s32.f32 %v1208
        %v1721 = vcvt.s32.f32 %v1209
        %v1722 = vcvt.s32.f32 %v1210
        %v1723 = vcvt.s32.f32 %v1211
        %v1724 = vcvt.s32.f32 %v1212
        %v1725 = vcvt.s32.f32 %v1213
        %v1726 = vcvt.s32.f32 %v1214
        %v1727 = vcvt.s32.f32 %v1215
        %v1728 = vcvt.s32.f32 %v1216
        %v1729 = vcvt.s32.f32 %v1217
        %v1730 = vcvt.s32.f32 %v1218
        %v1731 = vcvt.s32.f32 %v1219
        %v1732 = vcvt.s32.f32 %v1220
        %v1733 = vcvt.s32.f32 %v1221
        %v1734 = vcvt.s32.f32 %v1222
        %v1735 = vcvt.s32.f32 %v1223
        %v1736 = vcvt.s32.f32 %v1224
        %v1737 = vcvt.s32.f32 %v1225
        %v1738 = vcvt.s32.f32 %v1226
        %v1739 = vcvt.s32.f32 %v1227
        %v1740 = vcvt.s32.f32 %v1228
        %v1741 = vcvt.s32.f32 %v1229
        %v1742 = vcvt.s32.f32 %v1230
        %v1743 = vcvt.s32.f32 %v1231
        %v1744 = vcvt.s32.f32 %v1232
        %v1745 = vcvt.s32.f32 %v1233
        %v1746 = vcvt.s32.f32 %v1234
        %v1747 = vcvt.s32.f32 %v1235
        %v1748 = vcvt.s32.f32 %v1236
        %v1749 = vcvt.s32.f32 %v1237
        %v1750 = vcvt.s32.f32 %v1238
        %v1751 = vcvt.s32.f32 %v1239
        %v1752 = vcvt.s32.f32 %v1240
        %v1753 = vcvt.s32.f32 %v1241
        %v1754 = vcvt.s32.f32 %v1242
        %v1755 = vcvt.s32.f32 %v1243
        %v1756 = vcvt.s32.f32 %v1244
        %v1757 = vcvt.s32.f32 %v1245
        %v1758 = vcvt.s32.f32 %v1246
        %v1759 = vcvt.s32.f32 %v1247
        %v1760 = vcvt.s32.f32 %v1248
        %v1761 = vcvt.s32.f32 %v1249
        %v1762 = vcvt.s32.f32 %v1250
        %v1763 = vcvt.s32.f32 %v1251
        %v1764 = vcvt.s32.f32 %v1252
        %v1765 = vcvt.s32.f32 %v1253
        %v1766 = vcvt.s32.f32 %v1254
        %v1767 = vcvt.s32.f32 %v1255
        %v1768 = vcvt.s32.f32 %v1256
        %v1769 = vcvt.s32.f32 %v1257
        %v1770 = vcvt.s32.f32 %v1258
        %v1771 = vcvt.s32.f32 %v1259
        %v1772 = vcvt.s32.f32 %v1260
        %v1773 = vcvt.s32.f32 %v1261
        %v1774 = vcvt.s32.f32 %v1262
        %v1775 = vcvt.s32.f32 %v1263
        %v1776 = vcvt.s32.f32 %v1264
        %v1777 = vcvt.s32.f32 %v1265
        %v1778 = vcvt.s32.f32 %v1266
        %v1779 = vcvt.s32.f32 %v1267
        %v1780 = vcvt.s32.f32 %v1268
        %v1781 = vcvt.s32.f32 %v1269
        %v1782 = vcvt.s32.f32 %v1270
        %v1783 = vcvt.s32.f32 %v1271
        %v1784 = vcvt.s32.f32 %v1272
        %v1785 = vcvt.s32.f32 %v1273
        %v1786 = vcvt.s32.f32 %v1274
        %v1787 = vcvt.s32.f32 %v1275
        %v1788 = vcvt.s32.f32 %v1276
        %v1789 = vcvt.s32.f32 %v1277
        %v1790 = vcvt.s32.f32 %v1278
        %v1791 = vcvt.s32.f32 %v1279
        %v1792 = vcvt.s32.f32 %v1280
        %v1793 = vcvt.s32.f32 %v1281
        %v1794 = vcvt.s32.f32 %v1282
        %v1795 = vcvt.s32.f32 %v1283
        %v1796 = vcvt.s32.f32 %v1284
        %v1797 = vcvt.s32.f32 %v1285
        %v1798 = vcvt.s32.f32 %v1286
        %v1799 = vcvt.s32.f32 %v1287
        %v1800 = vcvt.s32.f32 %v1288
        %v1801 = vcvt.s32.f32 %v1289
        %v1802 = vcvt.s32.f32 %v1290
        %v1803 = vcvt.s32.f32 %v1291
        %v1804 = vcvt.s32.f32 %v1292
        %v1805 = vcvt.s32.f32 %v1293
        %v1806 = vcvt.s32.f32 %v1294
        %v1807 = vcvt.s32.f32 %v1295
        %v1808 = vcvt.s32.f32 %v1296
        %v1809 = vcvt.s32.f32 %v1297
        %v1810 = vcvt.s32.f32 %v1298
        %v1811 = vcvt.s32.f32 %v1299
        %v1812 = vcvt.s32.f32 %v1300
        %v1813 = vcvt.s32.f32 %v1301
        %v1814 = vcvt.s32.f32 %v1302
        %v1815 = vcvt.s32.f32 %v1303
        %v1816 = vcvt.s32.f32 %v1304
        %v1817 = vcvt.s32.f32 %v1305
        %v1818 = vcvt.s32.f32 %v1306
        %v1819 = vcvt.s32.f32 %v1307
        %v1820 = vcvt.s32.f32 %v1308
        %v1821 = vcvt.s32.f32 %v1309
        %v1822 = vcvt.s32.f32 %v1310
        %v1823 = vcvt.s32.f32 %v1311
        %v1824 = vcvt.s32.f32 %v1312
        %v1825 = vcvt.s32.f32 %v1313
        %v1826 = vcvt.s32.f32 %v1314
        %v1827 = vcvt.s32.f32 %v1315
        %v1828 = vcvt.s32.f32 %v1316
        %v1829 = vcvt.s32.f32 %v1317
        %v1830 = vcvt.s32.f32 %v1318
        %v1831 = vcvt.s32.f32 %v1319
        %v1832 = vcvt.s32.f32 %v1320
        %v1833 = vcvt.s32.f32 %v1321
        %v1834 = vcvt.s32.f32 %v1322
        %v1835 = vcvt.s32.f32 %v1323
        %v1836 = vcvt.s32.f32 %v1324
        %v1837 = vcvt.s32.f32 %v1325
        %v1838 = vcvt.s32.f32 %v1326
        %v1839 = vcvt.s32.f32 %v1327
        %v1840 = vcvt.s32.f32 %v1328
        %v1841 = vcvt.s32.f32 %v1329
        %v1842 = vcvt.s32.f32 %v1330
        %v1843 = vcvt.s32.f32 %v1331
        %v1844 = vcvt.s32.f32 %v1332
        %v1845 = vcvt.s32.f32 %v1333
        %v1846 = vcvt.s32.f32 %v1334
        %v1847 = vcvt.s32.f32 %v1335
        %v1848 = vcvt.s32.f32 %v1336
        %v1849 = vcvt.s32.f32 %v1337
        %v1850 = vcvt.s32.f32 %v1338
        %v1851 = vcvt.s32.f32 %v1339
        %v1852 = vcvt.s32.f32 %v1340
        %v1853 = vcvt.s32.f32 %v1341
        %v1854 = vcvt.s32.f32 %v1342
        %v1855 = vcvt.s32.f32 %v1343
        %v1856 = vcvt.s32.f32 %v1344
        %v1857 = vcvt.s32.f32 %v1345
        %v1858 = vcvt.s32.f32 %v1346
        %v1859 = vcvt.s32.f32 %v1347
        %v1860 = vcvt.s32.f32 %v1348
        %v1861 = vcvt.s32.f32 %v1349
        %v1862 = vcvt.s32.f32 %v1350
        %v1863 = vcvt.s32.f32 %v1351
        %v1864 = vcvt.s32.f32 %v1352
        %v1865 = vcvt.s32.f32 %v1353
        %v1866 = vcvt.s32.f32 %v1354
        %v1867 = vcvt.s32.f32 %v1355
        %v1868 = vcvt.s32.f32 %v1356
        %v1869 = vcvt.s32.f32 %v1357
        %v1870 = vcvt.s32.f32 %v1358
        %v1871 = vcvt.s32.f32 %v1359
        %v1872 = vcvt.s32.f32 %v1360
        %v1873 = vcvt.s32.f32 %v1361
        %v1874 = vcvt.s32.f32 %v1362
        %v1875 = vcvt.s32.f32 %v1363
        %v1876 = vcvt.s32.f32 %v1364
        %v1877 = vpack.c.bf16 %v1381, %v1365
        %v1878 = vpack.c.bf16 %v1382, %v1366
        %v1879 = vpack.c.bf16 %v1383, %v1367
        %v1880 = vpack.c.bf16 %v1384, %v1368
        %v1881 = vpack.c.bf16 %v1385, %v1369
        %v1882 = vpack.c.bf16 %v1386, %v1370
        %v1883 = vpack.c.bf16 %v1387, %v1371
        %v1884 = vpack.c.bf16 %v1388, %v1372
        %v1885 = vpack.c.bf16 %v1389, %v1373
        %v1886 = vpack.c.bf16 %v1390, %v1374
        %v1887 = vpack.c.bf16 %v1391, %v1375
        %v1888 = vpack.c.bf16 %v1392, %v1376
        %v1889 = vpack.c.bf16 %v1393, %v1377
        %v1890 = vpack.c.bf16 %v1394, %v1378
        %v1891 = vpack.c.bf16 %v1395, %v1379
        %v1892 = vpack.c.bf16 %v1396, %v1380
        %v1893 = vpack.c.bf16 %v1413, %v1397
        %v1894 = vpack.c.bf16 %v1414, %v1398
        %v1895 = vpack.c.bf16 %v1415, %v1399
        %v1896 = vpack.c.bf16 %v1416, %v1400
        %v1897 = vpack.c.bf16 %v1417, %v1401
        %v1898 = vpack.c.bf16 %v1418, %v1402
        %v1899 = vpack.c.bf16 %v1419, %v1403
        %v1900 = vpack.c.bf16 %v1420, %v1404
        %v1901 = vpack.c.bf16 %v1421, %v1405
        %v1902 = vpack.c.bf16 %v1422, %v1406
        %v1903 = vpack.c.bf16 %v1423, %v1407
        %v1904 = vpack.c.bf16 %v1424, %v1408
        %v1905 = vpack.c.bf16 %v1425, %v1409
        %v1906 = vpack.c.bf16 %v1426, %v1410
        %v1907 = vpack.c.bf16 %v1427, %v1411
        %v1908 = vpack.c.bf16 %v1428, %v1412
        %v1909 = vpack.c.bf16 %v1445, %v1429
        %v1910 = vpack.c.bf16 %v1446, %v1430
        %v1911 = vpack.c.bf16 %v1447, %v1431
        %v1912 = vpack.c.bf16 %v1448, %v1432
        %v1913 = vpack.c.bf16 %v1449, %v1433
        %v1914 = vpack.c.bf16 %v1450, %v1434
        %v1915 = vpack.c.bf16 %v1451, %v1435
        %v1916 = vpack.c.bf16 %v1452, %v1436
        %v1917 = vpack.c.bf16 %v1453, %v1437
        %v1918 = vpack.c.bf16 %v1454, %v1438
        %v1919 = vpack.c.bf16 %v1455, %v1439
        %v1920 = vpack.c.bf16 %v1456, %v1440
        %v1921 = vpack.c.bf16 %v1457, %v1441
        %v1922 = vpack.c.bf16 %v1458, %v1442
        %v1923 = vpack.c.bf16 %v1459, %v1443
        %v1924 = vpack.c.bf16 %v1460, %v1444
        %v1925 = vpack.c.bf16 %v1477, %v1461
        %v1926 = vpack.c.bf16 %v1478, %v1462
        %v1927 = vpack.c.bf16 %v1479, %v1463
        %v1928 = vpack.c.bf16 %v1480, %v1464
        %v1929 = vpack.c.bf16 %v1481, %v1465
        %v1930 = vpack.c.bf16 %v1482, %v1466
        %v1931 = vpack.c.bf16 %v1483, %v1467
        %v1932 = vpack.c.bf16 %v1484, %v1468
        %v1933 = vpack.c.bf16 %v1485, %v1469
        %v1934 = vpack.c.bf16 %v1486, %v1470
        %v1935 = vpack.c.bf16 %v1487, %v1471
        %v1936 = vpack.c.bf16 %v1488, %v1472
        %v1937 = vpack.c.bf16 %v1489, %v1473
        %v1938 = vpack.c.bf16 %v1490, %v1474
        %v1939 = vpack.c.bf16 %v1491, %v1475
        %v1940 = vpack.c.bf16 %v1492, %v1476
        %v1941 = vpack.c.bf16 %v1509, %v1493
        %v1942 = vpack.c.bf16 %v1510, %v1494
        %v1943 = vpack.c.bf16 %v1511, %v1495
        %v1944 = vpack.c.bf16 %v1512, %v1496
        %v1945 = vpack.c.bf16 %v1513, %v1497
        %v1946 = vpack.c.bf16 %v1514, %v1498
        %v1947 = vpack.c.bf16 %v1515, %v1499
        %v1948 = vpack.c.bf16 %v1516, %v1500
        %v1949 = vpack.c.bf16 %v1517, %v1501
        %v1950 = vpack.c.bf16 %v1518, %v1502
        %v1951 = vpack.c.bf16 %v1519, %v1503
        %v1952 = vpack.c.bf16 %v1520, %v1504
        %v1953 = vpack.c.bf16 %v1521, %v1505
        %v1954 = vpack.c.bf16 %v1522, %v1506
        %v1955 = vpack.c.bf16 %v1523, %v1507
        %v1956 = vpack.c.bf16 %v1524, %v1508
        %v1957 = vpack.c.bf16 %v1541, %v1525
        %v1958 = vpack.c.bf16 %v1542, %v1526
        %v1959 = vpack.c.bf16 %v1543, %v1527
        %v1960 = vpack.c.bf16 %v1544, %v1528
        %v1961 = vpack.c.bf16 %v1545, %v1529
        %v1962 = vpack.c.bf16 %v1546, %v1530
        %v1963 = vpack.c.bf16 %v1547, %v1531
        %v1964 = vpack.c.bf16 %v1548, %v1532
        %v1965 = vpack.c.bf16 %v1549, %v1533
        %v1966 = vpack.c.bf16 %v1550, %v1534
        %v1967 = vpack.c.bf16 %v1551, %v1535
        %v1968 = vpack.c.bf16 %v1552, %v1536
        %v1969 = vpack.c.bf16 %v1553, %v1537
        %v1970 = vpack.c.bf16 %v1554, %v1538
        %v1971 = vpack.c.bf16 %v1555, %v1539
        %v1972 = vpack.c.bf16 %v1556, %v1540
        %v1973 = vpack.c.bf16 %v1573, %v1557
        %v1974 = vpack.c.bf16 %v1574, %v1558
        %v1975 = vpack.c.bf16 %v1575, %v1559
        %v1976 = vpack.c.bf16 %v1576, %v1560
        %v1977 = vpack.c.bf16 %v1577, %v1561
        %v1978 = vpack.c.bf16 %v1578, %v1562
        %v1979 = vpack.c.bf16 %v1579, %v1563
        %v1980 = vpack.c.bf16 %v1580, %v1564
        %v1981 = vpack.c.bf16 %v1581, %v1565
        %v1982 = vpack.c.bf16 %v1582, %v1566
        %v1983 = vpack.c.bf16 %v1583, %v1567
        %v1984 = vpack.c.bf16 %v1584, %v1568
        %v1985 = vpack.c.bf16 %v1585, %v1569
        %v1986 = vpack.c.bf16 %v1586, %v1570
        %v1987 = vpack.c.bf16 %v1587, %v1571
        %v1988 = vpack.c.bf16 %v1588, %v1572
        %v1989 = vpack.c.bf16 %v1605, %v1589
        %v1990 = vpack.c.bf16 %v1606, %v1590
        %v1991 = vpack.c.bf16 %v1607, %v1591
        %v1992 = vpack.c.bf16 %v1608, %v1592
        %v1993 = vpack.c.bf16 %v1609, %v1593
        %v1994 = vpack.c.bf16 %v1610, %v1594
        %v1995 = vpack.c.bf16 %v1611, %v1595
        %v1996 = vpack.c.bf16 %v1612, %v1596
        %v1997 = vpack.c.bf16 %v1613, %v1597
        %v1998 = vpack.c.bf16 %v1614, %v1598
        %v1999 = vpack.c.bf16 %v1615, %v1599
        %v2000 = vpack.c.bf16 %v1616, %v1600
        %v2001 = vpack.c.bf16 %v1617, %v1601
        %v2002 = vpack.c.bf16 %v1618, %v1602
        %v2003 = vpack.c.bf16 %v1619, %v1603
        %v2004 = vpack.c.bf16 %v1620, %v1604
        %v2005 = vpack.c.bf16 %v1637, %v1621
        %v2006 = vpack.c.bf16 %v1638, %v1622
        %v2007 = vpack.c.bf16 %v1639, %v1623
        %v2008 = vpack.c.bf16 %v1640, %v1624
        %v2009 = vpack.c.bf16 %v1641, %v1625
        %v2010 = vpack.c.bf16 %v1642, %v1626
        %v2011 = vpack.c.bf16 %v1643, %v1627
        %v2012 = vpack.c.bf16 %v1644, %v1628
        %v2013 = vpack.c.bf16 %v1645, %v1629
        %v2014 = vpack.c.bf16 %v1646, %v1630
        %v2015 = vpack.c.bf16 %v1647, %v1631
        %v2016 = vpack.c.bf16 %v1648, %v1632
        %v2017 = vpack.c.bf16 %v1649, %v1633
        %v2018 = vpack.c.bf16 %v1650, %v1634
        %v2019 = vpack.c.bf16 %v1651, %v1635
        %v2020 = vpack.c.bf16 %v1652, %v1636
        %v2021 = vpack.c.bf16 %v1669, %v1653
        %v2022 = vpack.c.bf16 %v1670, %v1654
        %v2023 = vpack.c.bf16 %v1671, %v1655
        %v2024 = vpack.c.bf16 %v1672, %v1656
        %v2025 = vpack.c.bf16 %v1673, %v1657
        %v2026 = vpack.c.bf16 %v1674, %v1658
        %v2027 = vpack.c.bf16 %v1675, %v1659
        %v2028 = vpack.c.bf16 %v1676, %v1660
        %v2029 = vpack.c.bf16 %v1677, %v1661
        %v2030 = vpack.c.bf16 %v1678, %v1662
        %v2031 = vpack.c.bf16 %v1679, %v1663
        %v2032 = vpack.c.bf16 %v1680, %v1664
        %v2033 = vpack.c.bf16 %v1681, %v1665
        %v2034 = vpack.c.bf16 %v1682, %v1666
        %v2035 = vpack.c.bf16 %v1683, %v1667
        %v2036 = vpack.c.bf16 %v1684, %v1668
        %v2037 = vpack.c.bf16 %v1701, %v1685
        %v2038 = vpack.c.bf16 %v1702, %v1686
        %v2039 = vpack.c.bf16 %v1703, %v1687
        %v2040 = vpack.c.bf16 %v1704, %v1688
        %v2041 = vpack.c.bf16 %v1705, %v1689
        %v2042 = vpack.c.bf16 %v1706, %v1690
        %v2043 = vpack.c.bf16 %v1707, %v1691
        %v2044 = vpack.c.bf16 %v1708, %v1692
        %v2045 = vpack.c.bf16 %v1709, %v1693
        %v2046 = vpack.c.bf16 %v1710, %v1694
        %v2047 = vpack.c.bf16 %v1711, %v1695
        %v2048 = vpack.c.bf16 %v1712, %v1696
        %v2049 = vpack.c.bf16 %v1713, %v1697
        %v2050 = vpack.c.bf16 %v1714, %v1698
        %v2051 = vpack.c.bf16 %v1715, %v1699
        %v2052 = vpack.c.bf16 %v1716, %v1700
        %v2053 = vpack.c.bf16 %v1733, %v1717
        %v2054 = vpack.c.bf16 %v1734, %v1718
        %v2055 = vpack.c.bf16 %v1735, %v1719
        %v2056 = vpack.c.bf16 %v1736, %v1720
        %v2057 = vpack.c.bf16 %v1737, %v1721
        %v2058 = vpack.c.bf16 %v1738, %v1722
        %v2059 = vpack.c.bf16 %v1739, %v1723
        %v2060 = vpack.c.bf16 %v1740, %v1724
        %v2061 = vpack.c.bf16 %v1741, %v1725
        %v2062 = vpack.c.bf16 %v1742, %v1726
        %v2063 = vpack.c.bf16 %v1743, %v1727
        %v2064 = vpack.c.bf16 %v1744, %v1728
        %v2065 = vpack.c.bf16 %v1745, %v1729
        %v2066 = vpack.c.bf16 %v1746, %v1730
        %v2067 = vpack.c.bf16 %v1747, %v1731
        %v2068 = vpack.c.bf16 %v1748, %v1732
        %v2069 = vpack.c.bf16 %v1765, %v1749
        %v2070 = vpack.c.bf16 %v1766, %v1750
        %v2071 = vpack.c.bf16 %v1767, %v1751
        %v2072 = vpack.c.bf16 %v1768, %v1752
        %v2073 = vpack.c.bf16 %v1769, %v1753
        %v2074 = vpack.c.bf16 %v1770, %v1754
        %v2075 = vpack.c.bf16 %v1771, %v1755
        %v2076 = vpack.c.bf16 %v1772, %v1756
        %v2077 = vpack.c.bf16 %v1773, %v1757
        %v2078 = vpack.c.bf16 %v1774, %v1758
        %v2079 = vpack.c.bf16 %v1775, %v1759
        %v2080 = vpack.c.bf16 %v1776, %v1760
        %v2081 = vpack.c.bf16 %v1777, %v1761
        %v2082 = vpack.c.bf16 %v1778, %v1762
        %v2083 = vpack.c.bf16 %v1779, %v1763
        %v2084 = vpack.c.bf16 %v1780, %v1764
        %v2085 = vpack.c.bf16 %v1797, %v1781
        %v2086 = vpack.c.bf16 %v1798, %v1782
        %v2087 = vpack.c.bf16 %v1799, %v1783
        %v2088 = vpack.c.bf16 %v1800, %v1784
        %v2089 = vpack.c.bf16 %v1801, %v1785
        %v2090 = vpack.c.bf16 %v1802, %v1786
        %v2091 = vpack.c.bf16 %v1803, %v1787
        %v2092 = vpack.c.bf16 %v1804, %v1788
        %v2093 = vpack.c.bf16 %v1805, %v1789
        %v2094 = vpack.c.bf16 %v1806, %v1790
        %v2095 = vpack.c.bf16 %v1807, %v1791
        %v2096 = vpack.c.bf16 %v1808, %v1792
        %v2097 = vpack.c.bf16 %v1809, %v1793
        %v2098 = vpack.c.bf16 %v1810, %v1794
        %v2099 = vpack.c.bf16 %v1811, %v1795
        %v2100 = vpack.c.bf16 %v1812, %v1796
        %v2101 = vpack.c.bf16 %v1829, %v1813
        %v2102 = vpack.c.bf16 %v1830, %v1814
        %v2103 = vpack.c.bf16 %v1831, %v1815
        %v2104 = vpack.c.bf16 %v1832, %v1816
        %v2105 = vpack.c.bf16 %v1833, %v1817
        %v2106 = vpack.c.bf16 %v1834, %v1818
        %v2107 = vpack.c.bf16 %v1835, %v1819
        %v2108 = vpack.c.bf16 %v1836, %v1820
        %v2109 = vpack.c.bf16 %v1837, %v1821
        %v2110 = vpack.c.bf16 %v1838, %v1822
        %v2111 = vpack.c.bf16 %v1839, %v1823
        %v2112 = vpack.c.bf16 %v1840, %v1824
        %v2113 = vpack.c.bf16 %v1841, %v1825
        %v2114 = vpack.c.bf16 %v1842, %v1826
        %v2115 = vpack.c.bf16 %v1843, %v1827
        %v2116 = vpack.c.bf16 %v1844, %v1828
        %v2117 = vpack.c.bf16 %v1861, %v1845
        %v2118 = vpack.c.bf16 %v1862, %v1846
        %v2119 = vpack.c.bf16 %v1863, %v1847
        %v2120 = vpack.c.bf16 %v1864, %v1848
        %v2121 = vpack.c.bf16 %v1865, %v1849
        %v2122 = vpack.c.bf16 %v1866, %v1850
        %v2123 = vpack.c.bf16 %v1867, %v1851
        %v2124 = vpack.c.bf16 %v1868, %v1852
        %v2125 = vpack.c.bf16 %v1869, %v1853
        %v2126 = vpack.c.bf16 %v1870, %v1854
        %v2127 = vpack.c.bf16 %v1871, %v1855
        %v2128 = vpack.c.bf16 %v1872, %v1856
        %v2129 = vpack.c.bf16 %v1873, %v1857
        %v2130 = vpack.c.bf16 %v1874, %v1858
        %v2131 = vpack.c.bf16 %v1875, %v1859
        %v2132 = vpack.c.bf16 %v1876, %v1860
        %v2133 = vld [vmem:[#allocation5] sm:$0xff]
        %v2134 = vld [vmem:[#allocation5 + $0x8] sm:$0xff]
        %v2137 = vunpack.c.l.b16 %v2133
        %v2138 = vunpack.c.h.b16 %v2133
        %v2139 = vunpack.c.l.b16 %v2134
        %v2140 = vunpack.c.h.b16 %v2134
        %v2141 = vpack.c.b16 %v2139, %v2137
        %v2142 = vpack.c.b16 %v2140, %v2138
        %2145 = vmatprep.subr.bf16.mxu0 %v1878
        %2146 = vmatpush1.bf16.msra.mxu0 %v1877
        %2147 = vmatprep.subr.bf16.mxu0 %v1894
        %2148 = vmatpush1.bf16.msra.mxu0 %v1893
        %2149 = vmatprep.subr.bf16.mxu0 %v1910
        %2150 = vmatpush1.bf16.msra.mxu0 %v1909
        %2151 = vmatprep.subr.bf16.mxu0 %v1926
        %2152 = vmatpush1.bf16.msra.mxu0 %v1925
        %2153 = vmatprep.subr.bf16.mxu0 %v1942
        %2154 = vmatpush1.bf16.msra.mxu0 %v1941
        %2155 = vmatprep.subr.bf16.mxu0 %v1958
        %2156 = vmatpush1.bf16.msra.mxu0 %v1957
        %2157 = vmatprep.subr.bf16.mxu0 %v1974
        %2158 = vmatpush1.bf16.msra.mxu0 %v1973
        %2159 = vmatprep.subr.bf16.mxu0 %v1990
        %2160 = vmatpush1.bf16.msra.mxu0 %v1989
        %2161 = vmatprep.subr.bf16.mxu0 %v2006
        %2162 = vmatpush1.bf16.msra.mxu0 %v2005
        %2163 = vmatprep.subr.bf16.mxu0 %v2022
        %2164 = vmatpush1.bf16.msra.mxu0 %v2021
        %2165 = vmatprep.subr.bf16.mxu0 %v2038
        %2166 = vmatpush1.bf16.msra.mxu0 %v2037
        %2167 = vmatprep.subr.bf16.mxu0 %v2054
        %2168 = vmatpush1.bf16.msra.mxu0 %v2053
        %2169 = vmatprep.subr.bf16.mxu0 %v2070
        %2170 = vmatpush1.bf16.msra.mxu0 %v2069
        %2171 = vmatprep.subr.bf16.mxu0 %v2086
        %2172 = vmatpush1.bf16.msra.mxu0 %v2085
        %2173 = vmatprep.subr.bf16.mxu0 %v2102
        %2174 = vmatpush1.bf16.msra.mxu0 %v2101
        %2175 = vmatprep.subr.bf16.mxu0 %v2118
        %2176 = vmatpush1.bf16.msra.mxu0 %v2117
        %2177 = vmatprep.mubr.bf16.mxu0 %v2142
        %2178 = vmatmul.mubr.bf16.gmra.mrb[0].mxu0 %v2141
        %v2179 = vpop.f32.mrb[0].mxu0
        %v2180 = vadd.f32 0.0, %v2179
        %v2181 = vpop.f32.mrb[0].mxu0
        %v2182 = vadd.f32 0.0, %v2181
        %v2183 = vpop.f32.mrb[0].mxu0
        %v2184 = vadd.f32 0.0, %v2183
        %v2185 = vpop.f32.mrb[0].mxu0
        %v2186 = vadd.f32 0.0, %v2185
        %2187 = vdwg.mxu0
        %2188 = vmatprep.subr.bf16.mxu0 %v1880
        %2189 = vmatpush1.bf16.msra.mxu0 %v1879
        %2190 = vmatprep.subr.bf16.mxu0 %v1896
        %2191 = vmatpush1.bf16.msra.mxu0 %v1895
        %2192 = vmatprep.subr.bf16.mxu0 %v1912
        %2193 = vmatpush1.bf16.msra.mxu0 %v1911
        %2194 = vmatprep.subr.bf16.mxu0 %v1928
        %2195 = vmatpush1.bf16.msra.mxu0 %v1927
        %2196 = vmatprep.subr.bf16.mxu0 %v1944
        %2197 = vmatpush1.bf16.msra.mxu0 %v1943
        %2198 = vmatprep.subr.bf16.mxu0 %v1960
        %2199 = vmatpush1.bf16.msra.mxu0 %v1959
        %2200 = vmatprep.subr.bf16.mxu0 %v1976
        %2201 = vmatpush1.bf16.msra.mxu0 %v1975
        %2202 = vmatprep.subr.bf16.mxu0 %v1992
        %2203 = vmatpush1.bf16.msra.mxu0 %v1991
        %2204 = vmatprep.subr.bf16.mxu0 %v2008
        %2205 = vmatpush1.bf16.msra.mxu0 %v2007
        %2206 = vmatprep.subr.bf16.mxu0 %v2024
        %2207 = vmatpush1.bf16.msra.mxu0 %v2023
        %2208 = vmatprep.subr.bf16.mxu0 %v2040
        %2209 = vmatpush1.bf16.msra.mxu0 %v2039
        %2210 = vmatprep.subr.bf16.mxu0 %v2056
        %2211 = vmatpush1.bf16.msra.mxu0 %v2055
        %2212 = vmatprep.subr.bf16.mxu0 %v2072
        %2213 = vmatpush1.bf16.msra.mxu0 %v2071
        %2214 = vmatprep.subr.bf16.mxu0 %v2088
        %2215 = vmatpush1.bf16.msra.mxu0 %v2087
        %2216 = vmatprep.subr.bf16.mxu0 %v2104
        %2217 = vmatpush1.bf16.msra.mxu0 %v2103
        %2218 = vmatprep.subr.bf16.mxu0 %v2120
        %2219 = vmatpush1.bf16.msra.mxu0 %v2119
        %2220 = vmatprep.mubr.bf16.mxu0 %v2142
        %2221 = vmatmul.mubr.bf16.gmra.mrb[0].mxu0 %v2141
        %v2222 = vpop.f32.mrb[0].mxu0
        %v2223 = vadd.f32 0.0, %v2222
        %v2224 = vpop.f32.mrb[0].mxu0
        %v2225 = vadd.f32 0.0, %v2224
        %v2226 = vpop.f32.mrb[0].mxu0
        %v2227 = vadd.f32 0.0, %v2226
        %v2228 = vpop.f32.mrb[0].mxu0
        %v2229 = vadd.f32 0.0, %v2228
        %2230 = vdwg.mxu0
        %2231 = vmatprep.subr.bf16.mxu0 %v1882
        %2232 = vmatpush1.bf16.msra.mxu0 %v1881
        %2233 = vmatprep.subr.bf16.mxu0 %v1898
        %2234 = vmatpush1.bf16.msra.mxu0 %v1897
        %2235 = vmatprep.subr.bf16.mxu0 %v1914
        %2236 = vmatpush1.bf16.msra.mxu0 %v1913
        %2237 = vmatprep.subr.bf16.mxu0 %v1930
        %2238 = vmatpush1.bf16.msra.mxu0 %v1929
        %2239 = vmatprep.subr.bf16.mxu0 %v1946
        %2240 = vmatpush1.bf16.msra.mxu0 %v1945
        %2241 = vmatprep.subr.bf16.mxu0 %v1962
        %2242 = vmatpush1.bf16.msra.mxu0 %v1961
        %2243 = vmatprep.subr.bf16.mxu0 %v1978
        %2244 = vmatpush1.bf16.msra.mxu0 %v1977
        %2245 = vmatprep.subr.bf16.mxu0 %v1994
        %2246 = vmatpush1.bf16.msra.mxu0 %v1993
        %2247 = vmatprep.subr.bf16.mxu0 %v2010
        %2248 = vmatpush1.bf16.msra.mxu0 %v2009
        %2249 = vmatprep.subr.bf16.mxu0 %v2026
        %2250 = vmatpush1.bf16.msra.mxu0 %v2025
        %2251 = vmatprep.subr.bf16.mxu0 %v2042
        %2252 = vmatpush1.bf16.msra.mxu0 %v2041
        %2253 = vmatprep.subr.bf16.mxu0 %v2058
        %2254 = vmatpush1.bf16.msra.mxu0 %v2057
        %2255 = vmatprep.subr.bf16.mxu0 %v2074
        %2256 = vmatpush1.bf16.msra.mxu0 %v2073
        %2257 = vmatprep.subr.bf16.mxu0 %v2090
        %2258 = vmatpush1.bf16.msra.mxu0 %v2089
        %2259 = vmatprep.subr.bf16.mxu0 %v2106
        %2260 = vmatpush1.bf16.msra.mxu0 %v2105
        %2261 = vmatprep.subr.bf16.mxu0 %v2122
        %2262 = vmatpush1.bf16.msra.mxu0 %v2121
        %2263 = vmatprep.mubr.bf16.mxu0 %v2142
        %2264 = vmatmul.mubr.bf16.gmra.mrb[0].mxu0 %v2141
        %v2265 = vpop.f32.mrb[0].mxu0
        %v2266 = vadd.f32 0.0, %v2265
        %v2267 = vpop.f32.mrb[0].mxu0
        %v2268 = vadd.f32 0.0, %v2267
        %v2269 = vpop.f32.mrb[0].mxu0
        %v2270 = vadd.f32 0.0, %v2269
        %v2271 = vpop.f32.mrb[0].mxu0
        %v2272 = vadd.f32 0.0, %v2271
        %2273 = vdwg.mxu0
        %2274 = vmatprep.subr.bf16.mxu0 %v1884
        %2275 = vmatpush1.bf16.msra.mxu0 %v1883
        %2276 = vmatprep.subr.bf16.mxu0 %v1900
        %2277 = vmatpush1.bf16.msra.mxu0 %v1899
        %2278 = vmatprep.subr.bf16.mxu0 %v1916
        %2279 = vmatpush1.bf16.msra.mxu0 %v1915
        %2280 = vmatprep.subr.bf16.mxu0 %v1932
        %2281 = vmatpush1.bf16.msra.mxu0 %v1931
        %2282 = vmatprep.subr.bf16.mxu0 %v1948
        %2283 = vmatpush1.bf16.msra.mxu0 %v1947
        %2284 = vmatprep.subr.bf16.mxu0 %v1964
        %2285 = vmatpush1.bf16.msra.mxu0 %v1963
        %2286 = vmatprep.subr.bf16.mxu0 %v1980
        %2287 = vmatpush1.bf16.msra.mxu0 %v1979
        %2288 = vmatprep.subr.bf16.mxu0 %v1996
        %2289 = vmatpush1.bf16.msra.mxu0 %v1995
        %2290 = vmatprep.subr.bf16.mxu0 %v2012
        %2291 = vmatpush1.bf16.msra.mxu0 %v2011
        %2292 = vmatprep.subr.bf16.mxu0 %v2028
        %2293 = vmatpush1.bf16.msra.mxu0 %v2027
        %2294 = vmatprep.subr.bf16.mxu0 %v2044
        %2295 = vmatpush1.bf16.msra.mxu0 %v2043
        %2296 = vmatprep.subr.bf16.mxu0 %v2060
        %2297 = vmatpush1.bf16.msra.mxu0 %v2059
        %2298 = vmatprep.subr.bf16.mxu0 %v2076
        %2299 = vmatpush1.bf16.msra.mxu0 %v2075
        %2300 = vmatprep.subr.bf16.mxu0 %v2092
        %2301 = vmatpush1.bf16.msra.mxu0 %v2091
        %2302 = vmatprep.subr.bf16.mxu0 %v2108
        %2303 = vmatpush1.bf16.msra.mxu0 %v2107
        %2304 = vmatprep.subr.bf16.mxu0 %v2124
        %2305 = vmatpush1.bf16.msra.mxu0 %v2123
        %2306 = vmatprep.mubr.bf16.mxu0 %v2142
        %2307 = vmatmul.mubr.bf16.gmra.mrb[0].mxu0 %v2141
        %v2308 = vpop.f32.mrb[0].mxu0
        %v2309 = vadd.f32 0.0, %v2308
        %v2310 = vpop.f32.mrb[0].mxu0
        %v2311 = vadd.f32 0.0, %v2310
        %v2312 = vpop.f32.mrb[0].mxu0
        %v2313 = vadd.f32 0.0, %v2312
        %v2314 = vpop.f32.mrb[0].mxu0
        %v2315 = vadd.f32 0.0, %v2314
        %2316 = vdwg.mxu0
        %2317 = vmatprep.subr.bf16.mxu0 %v1886
        %2318 = vmatpush1.bf16.msra.mxu0 %v1885
        %2319 = vmatprep.subr.bf16.mxu0 %v1902
        %2320 = vmatpush1.bf16.msra.mxu0 %v1901
        %2321 = vmatprep.subr.bf16.mxu0 %v1918
        %2322 = vmatpush1.bf16.msra.mxu0 %v1917
        %2323 = vmatprep.subr.bf16.mxu0 %v1934
        %2324 = vmatpush1.bf16.msra.mxu0 %v1933
        %2325 = vmatprep.subr.bf16.mxu0 %v1950
        %2326 = vmatpush1.bf16.msra.mxu0 %v1949
        %2327 = vmatprep.subr.bf16.mxu0 %v1966
        %2328 = vmatpush1.bf16.msra.mxu0 %v1965
        %2329 = vmatprep.subr.bf16.mxu0 %v1982
        %2330 = vmatpush1.bf16.msra.mxu0 %v1981
        %2331 = vmatprep.subr.bf16.mxu0 %v1998
        %2332 = vmatpush1.bf16.msra.mxu0 %v1997
        %2333 = vmatprep.subr.bf16.mxu0 %v2014
        %2334 = vmatpush1.bf16.msra.mxu0 %v2013
        %2335 = vmatprep.subr.bf16.mxu0 %v2030
        %2336 = vmatpush1.bf16.msra.mxu0 %v2029
        %2337 = vmatprep.subr.bf16.mxu0 %v2046
        %2338 = vmatpush1.bf16.msra.mxu0 %v2045
        %2339 = vmatprep.subr.bf16.mxu0 %v2062
        %2340 = vmatpush1.bf16.msra.mxu0 %v2061
        %2341 = vmatprep.subr.bf16.mxu0 %v2078
        %2342 = vmatpush1.bf16.msra.mxu0 %v2077
        %2343 = vmatprep.subr.bf16.mxu0 %v2094
        %2344 = vmatpush1.bf16.msra.mxu0 %v2093
        %2345 = vmatprep.subr.bf16.mxu0 %v2110
        %2346 = vmatpush1.bf16.msra.mxu0 %v2109
        %2347 = vmatprep.subr.bf16.mxu0 %v2126
        %2348 = vmatpush1.bf16.msra.mxu0 %v2125
        %2349 = vmatprep.mubr.bf16.mxu0 %v2142
        %2350 = vmatmul.mubr.bf16.gmra.mrb[0].mxu0 %v2141
        %v2351 = vpop.f32.mrb[0].mxu0
        %v2352 = vadd.f32 0.0, %v2351
        %v2353 = vpop.f32.mrb[0].mxu0
        %v2354 = vadd.f32 0.0, %v2353
        %v2355 = vpop.f32.mrb[0].mxu0
        %v2356 = vadd.f32 0.0, %v2355
        %v2357 = vpop.f32.mrb[0].mxu0
        %v2358 = vadd.f32 0.0, %v2357
        %2359 = vdwg.mxu0
        %2360 = vmatprep.subr.bf16.mxu0 %v1888
        %2361 = vmatpush1.bf16.msra.mxu0 %v1887
        %2362 = vmatprep.subr.bf16.mxu0 %v1904
        %2363 = vmatpush1.bf16.msra.mxu0 %v1903
        %2364 = vmatprep.subr.bf16.mxu0 %v1920
        %2365 = vmatpush1.bf16.msra.mxu0 %v1919
        %2366 = vmatprep.subr.bf16.mxu0 %v1936
        %2367 = vmatpush1.bf16.msra.mxu0 %v1935
        %2368 = vmatprep.subr.bf16.mxu0 %v1952
        %2369 = vmatpush1.bf16.msra.mxu0 %v1951
        %2370 = vmatprep.subr.bf16.mxu0 %v1968
        %2371 = vmatpush1.bf16.msra.mxu0 %v1967
        %2372 = vmatprep.subr.bf16.mxu0 %v1984
        %2373 = vmatpush1.bf16.msra.mxu0 %v1983
        %2374 = vmatprep.subr.bf16.mxu0 %v2000
        %2375 = vmatpush1.bf16.msra.mxu0 %v1999
        %2376 = vmatprep.subr.bf16.mxu0 %v2016
        %2377 = vmatpush1.bf16.msra.mxu0 %v2015
        %2378 = vmatprep.subr.bf16.mxu0 %v2032
        %2379 = vmatpush1.bf16.msra.mxu0 %v2031
        %2380 = vmatprep.subr.bf16.mxu0 %v2048
        %2381 = vmatpush1.bf16.msra.mxu0 %v2047
        %2382 = vmatprep.subr.bf16.mxu0 %v2064
        %2383 = vmatpush1.bf16.msra.mxu0 %v2063
        %2384 = vmatprep.subr.bf16.mxu0 %v2080
        %2385 = vmatpush1.bf16.msra.mxu0 %v2079
        %2386 = vmatprep.subr.bf16.mxu0 %v2096
        %2387 = vmatpush1.bf16.msra.mxu0 %v2095
        %2388 = vmatprep.subr.bf16.mxu0 %v2112
        %2389 = vmatpush1.bf16.msra.mxu0 %v2111
        %2390 = vmatprep.subr.bf16.mxu0 %v2128
        %2391 = vmatpush1.bf16.msra.mxu0 %v2127
        %2392 = vmatprep.mubr.bf16.mxu0 %v2142
        %2393 = vmatmul.mubr.bf16.gmra.mrb[0].mxu0 %v2141
        %v2394 = vpop.f32.mrb[0].mxu0
        %v2395 = vadd.f32 0.0, %v2394
        %v2396 = vpop.f32.mrb[0].mxu0
        %v2397 = vadd.f32 0.0, %v2396
        %v2398 = vpop.f32.mrb[0].mxu0
        %v2399 = vadd.f32 0.0, %v2398
        %v2400 = vpop.f32.mrb[0].mxu0
        %v2401 = vadd.f32 0.0, %v2400
        %2402 = vdwg.mxu0
        %2403 = vmatprep.subr.bf16.mxu0 %v1890
        %2404 = vmatpush1.bf16.msra.mxu0 %v1889
        %2405 = vmatprep.subr.bf16.mxu0 %v1906
        %2406 = vmatpush1.bf16.msra.mxu0 %v1905
        %2407 = vmatprep.subr.bf16.mxu0 %v1922
        %2408 = vmatpush1.bf16.msra.mxu0 %v1921
        %2409 = vmatprep.subr.bf16.mxu0 %v1938
        %2410 = vmatpush1.bf16.msra.mxu0 %v1937
        %2411 = vmatprep.subr.bf16.mxu0 %v1954
        %2412 = vmatpush1.bf16.msra.mxu0 %v1953
        %2413 = vmatprep.subr.bf16.mxu0 %v1970
        %2414 = vmatpush1.bf16.msra.mxu0 %v1969
        %2415 = vmatprep.subr.bf16.mxu0 %v1986
        %2416 = vmatpush1.bf16.msra.mxu0 %v1985
        %2417 = vmatprep.subr.bf16.mxu0 %v2002
        %2418 = vmatpush1.bf16.msra.mxu0 %v2001
        %2419 = vmatprep.subr.bf16.mxu0 %v2018
        %2420 = vmatpush1.bf16.msra.mxu0 %v2017
        %2421 = vmatprep.subr.bf16.mxu0 %v2034
        %2422 = vmatpush1.bf16.msra.mxu0 %v2033
        %2423 = vmatprep.subr.bf16.mxu0 %v2050
        %2424 = vmatpush1.bf16.msra.mxu0 %v2049
        %2425 = vmatprep.subr.bf16.mxu0 %v2066
        %2426 = vmatpush1.bf16.msra.mxu0 %v2065
        %2427 = vmatprep.subr.bf16.mxu0 %v2082
        %2428 = vmatpush1.bf16.msra.mxu0 %v2081
        %2429 = vmatprep.subr.bf16.mxu0 %v2098
        %2430 = vmatpush1.bf16.msra.mxu0 %v2097
        %2431 = vmatprep.subr.bf16.mxu0 %v2114
        %2432 = vmatpush1.bf16.msra.mxu0 %v2113
        %2433 = vmatprep.subr.bf16.mxu0 %v2130
        %2434 = vmatpush1.bf16.msra.mxu0 %v2129
        %2435 = vmatprep.mubr.bf16.mxu0 %v2142
        %2436 = vmatmul.mubr.bf16.gmra.mrb[0].mxu0 %v2141
        %v2437 = vpop.f32.mrb[0].mxu0
        %v2438 = vadd.f32 0.0, %v2437
        %v2439 = vpop.f32.mrb[0].mxu0
        %v2440 = vadd.f32 0.0, %v2439
        %v2441 = vpop.f32.mrb[0].mxu0
        %v2442 = vadd.f32 0.0, %v2441
        %v2443 = vpop.f32.mrb[0].mxu0
        %v2444 = vadd.f32 0.0, %v2443
        %2445 = vdwg.mxu0
        %2446 = vmatprep.subr.bf16.mxu0 %v1892
        %2447 = vmatpush1.bf16.msra.mxu0 %v1891
        %2448 = vmatprep.subr.bf16.mxu0 %v1908
        %2449 = vmatpush1.bf16.msra.mxu0 %v1907
        %2450 = vmatprep.subr.bf16.mxu0 %v1924
        %2451 = vmatpush1.bf16.msra.mxu0 %v1923
        %2452 = vmatprep.subr.bf16.mxu0 %v1940
        %2453 = vmatpush1.bf16.msra.mxu0 %v1939
        %2454 = vmatprep.subr.bf16.mxu0 %v1956
        %2455 = vmatpush1.bf16.msra.mxu0 %v1955
        %2456 = vmatprep.subr.bf16.mxu0 %v1972
        %2457 = vmatpush1.bf16.msra.mxu0 %v1971
        %2458 = vmatprep.subr.bf16.mxu0 %v1988
        %2459 = vmatpush1.bf16.msra.mxu0 %v1987
        %2460 = vmatprep.subr.bf16.mxu0 %v2004
        %2461 = vmatpush1.bf16.msra.mxu0 %v2003
        %2462 = vmatprep.subr.bf16.mxu0 %v2020
        %2463 = vmatpush1.bf16.msra.mxu0 %v2019
        %2464 = vmatprep.subr.bf16.mxu0 %v2036
        %2465 = vmatpush1.bf16.msra.mxu0 %v2035
        %2466 = vmatprep.subr.bf16.mxu0 %v2052
        %2467 = vmatpush1.bf16.msra.mxu0 %v2051
        %2468 = vmatprep.subr.bf16.mxu0 %v2068
        %2469 = vmatpush1.bf16.msra.mxu0 %v2067
        %2470 = vmatprep.subr.bf16.mxu0 %v2084
        %2471 = vmatpush1.bf16.msra.mxu0 %v2083
        %2472 = vmatprep.subr.bf16.mxu0 %v2100
        %2473 = vmatpush1.bf16.msra.mxu0 %v2099
        %2474 = vmatprep.subr.bf16.mxu0 %v2116
        %2475 = vmatpush1.bf16.msra.mxu0 %v2115
        %2476 = vmatprep.subr.bf16.mxu0 %v2132
        %2477 = vmatpush1.bf16.msra.mxu0 %v2131
        %2478 = vmatprep.mubr.bf16.mxu0 %v2142
        %2479 = vmatmul.mubr.bf16.gmra.mrb[0].mxu0 %v2141
        %v2480 = vpop.f32.mrb[0].mxu0
        %v2481 = vadd.f32 0.0, %v2480
        %v2482 = vpop.f32.mrb[0].mxu0
        %v2483 = vadd.f32 0.0, %v2482
        %v2484 = vpop.f32.mrb[0].mxu0
        %v2485 = vadd.f32 0.0, %v2484
        %v2486 = vpop.f32.mrb[0].mxu0
        %v2487 = vadd.f32 0.0, %v2486
        %2488 = vdwg.mxu0
        %v2489 = vlaneseq
        %v2490 = vshrl.u32 %v2489, 7
        %v2491 = vsub.s32 0, %v2490
        %v2492 = vrot.slane %v196, %v2491
        %v2493 = vlaneseq
        %v2494 = vshrl.u32 %v2493, 7
        %v2495 = vsub.s32 1, %v2494
        %v2496 = vrot.slane %v196, %v2495
        %v2497 = vlaneseq
        %v2498 = vshrl.u32 %v2497, 7
        %v2499 = vsub.s32 2, %v2498
        %v2500 = vrot.slane %v196, %v2499
        %v2501 = vlaneseq
        %v2502 = vshrl.u32 %v2501, 7
        %v2503 = vsub.s32 3, %v2502
        %v2504 = vrot.slane %v196, %v2503
        %v2505 = vlaneseq
        %v2506 = vshrl.u32 %v2505, 7
        %v2507 = vsub.s32 4, %v2506
        %v2508 = vrot.slane %v196, %v2507
        %v2509 = vlaneseq
        %v2510 = vshrl.u32 %v2509, 7
        %v2511 = vsub.s32 5, %v2510
        %v2512 = vrot.slane %v196, %v2511
        %v2513 = vlaneseq
        %v2514 = vshrl.u32 %v2513, 7
        %v2515 = vsub.s32 6, %v2514
        %v2516 = vrot.slane %v196, %v2515
        %v2517 = vlaneseq
        %v2518 = vshrl.u32 %v2517, 7
        %v2519 = vsub.s32 7, %v2518
        %v2520 = vrot.slane %v196, %v2519
        %v2521 = vlaneseq
        %v2522 = vshrl.u32 %v2521, 7
        %v2523 = vsub.s32 0, %v2522
        %v2524 = vrot.slane %v197, %v2523
        %v2525 = vlaneseq
        %v2526 = vshrl.u32 %v2525, 7
        %v2527 = vsub.s32 1, %v2526
        %v2528 = vrot.slane %v197, %v2527
        %v2529 = vlaneseq
        %v2530 = vshrl.u32 %v2529, 7
        %v2531 = vsub.s32 2, %v2530
        %v2532 = vrot.slane %v197, %v2531
        %v2533 = vlaneseq
        %v2534 = vshrl.u32 %v2533, 7
        %v2535 = vsub.s32 3, %v2534
        %v2536 = vrot.slane %v197, %v2535
        %v2537 = vlaneseq
        %v2538 = vshrl.u32 %v2537, 7
        %v2539 = vsub.s32 4, %v2538
        %v2540 = vrot.slane %v197, %v2539
        %v2541 = vlaneseq
        %v2542 = vshrl.u32 %v2541, 7
        %v2543 = vsub.s32 5, %v2542
        %v2544 = vrot.slane %v197, %v2543
        %v2545 = vlaneseq
        %v2546 = vshrl.u32 %v2545, 7
        %v2547 = vsub.s32 6, %v2546
        %v2548 = vrot.slane %v197, %v2547
        %v2549 = vlaneseq
        %v2550 = vshrl.u32 %v2549, 7
        %v2551 = vsub.s32 7, %v2550
        %v2552 = vrot.slane %v197, %v2551
        %vm2553 = vcmp.eq.s32.totalorder %v245, %v2492
        %vm2554 = vcmp.eq.s32.totalorder %v245, %v2496
        %vm2555 = vcmp.eq.s32.totalorder %v245, %v2500
        %vm2556 = vcmp.eq.s32.totalorder %v245, %v2504
        %vm2557 = vcmp.eq.s32.totalorder %v245, %v2508
        %vm2558 = vcmp.eq.s32.totalorder %v245, %v2512
        %vm2559 = vcmp.eq.s32.totalorder %v245, %v2516
        %vm2560 = vcmp.eq.s32.totalorder %v245, %v2520
        %vm2561 = vcmp.eq.s32.totalorder %v245, %v2524
        %vm2562 = vcmp.eq.s32.totalorder %v245, %v2528
        %vm2563 = vcmp.eq.s32.totalorder %v245, %v2532
        %vm2564 = vcmp.eq.s32.totalorder %v245, %v2536
        %vm2565 = vcmp.eq.s32.totalorder %v245, %v2540
        %vm2566 = vcmp.eq.s32.totalorder %v245, %v2544
        %vm2567 = vcmp.eq.s32.totalorder %v245, %v2548
        %vm2568 = vcmp.eq.s32.totalorder %v245, %v2552
        %vm2569 = vcmp.eq.s32.totalorder %v246, %v2492
        %vm2570 = vcmp.eq.s32.totalorder %v246, %v2496
        %vm2571 = vcmp.eq.s32.totalorder %v246, %v2500
        %vm2572 = vcmp.eq.s32.totalorder %v246, %v2504
        %vm2573 = vcmp.eq.s32.totalorder %v246, %v2508
        %vm2574 = vcmp.eq.s32.totalorder %v246, %v2512
        %vm2575 = vcmp.eq.s32.totalorder %v246, %v2516
        %vm2576 = vcmp.eq.s32.totalorder %v246, %v2520
        %vm2577 = vcmp.eq.s32.totalorder %v246, %v2524
        %vm2578 = vcmp.eq.s32.totalorder %v246, %v2528
        %vm2579 = vcmp.eq.s32.totalorder %v246, %v2532
        %vm2580 = vcmp.eq.s32.totalorder %v246, %v2536
        %vm2581 = vcmp.eq.s32.totalorder %v246, %v2540
        %vm2582 = vcmp.eq.s32.totalorder %v246, %v2544
        %vm2583 = vcmp.eq.s32.totalorder %v246, %v2548
        %vm2584 = vcmp.eq.s32.totalorder %v246, %v2552
        %v2585 = vsel %vm2553, %v2180, 0.0
        %v2586 = vsel %vm2554, %v2182, 0.0
        %v2587 = vsel %vm2555, %v2223, 0.0
        %v2588 = vsel %vm2556, %v2225, 0.0
        %v2589 = vsel %vm2557, %v2266, 0.0
        %v2590 = vsel %vm2558, %v2268, 0.0
        %v2591 = vsel %vm2559, %v2309, 0.0
        %v2592 = vsel %vm2560, %v2311, 0.0
        %v2593 = vsel %vm2561, %v2352, 0.0
        %v2594 = vsel %vm2562, %v2354, 0.0
        %v2595 = vsel %vm2563, %v2395, 0.0
        %v2596 = vsel %vm2564, %v2397, 0.0
        %v2597 = vsel %vm2565, %v2438, 0.0
        %v2598 = vsel %vm2566, %v2440, 0.0
        %v2599 = vsel %vm2567, %v2481, 0.0
        %v2600 = vsel %vm2568, %v2483, 0.0
        %v2601 = vsel %vm2569, %v2184, 0.0
        %v2602 = vsel %vm2570, %v2186, 0.0
        %v2603 = vsel %vm2571, %v2227, 0.0
        %v2604 = vsel %vm2572, %v2229, 0.0
        %v2605 = vsel %vm2573, %v2270, 0.0
        %v2606 = vsel %vm2574, %v2272, 0.0
        %v2607 = vsel %vm2575, %v2313, 0.0
        %v2608 = vsel %vm2576, %v2315, 0.0
        %v2609 = vsel %vm2577, %v2356, 0.0
        %v2610 = vsel %vm2578, %v2358, 0.0
        %v2611 = vsel %vm2579, %v2399, 0.0
        %v2612 = vsel %vm2580, %v2401, 0.0
        %v2613 = vsel %vm2581, %v2442, 0.0
        %v2614 = vsel %vm2582, %v2444, 0.0
        %v2615 = vsel %vm2583, %v2485, 0.0
        %v2616 = vsel %vm2584, %v2487, 0.0
        %v2617 = vadd.f32 %v2585, %v2601
        %v2618 = vrot.slane %v2617, 4
        %v2619 = vadd.f32 %v2617, %v2618
        %v2620 = vrot.slane %v2619, 2
        %v2621 = vadd.f32 %v2619, %v2620
        %v2622 = vrot.slane %v2621, 1
        %v2623 = vadd.f32 %v2621, %v2622
        %v2624 = vadd.f32 %v2586, %v2602
        %v2625 = vrot.slane %v2624, 4
        %v2626 = vadd.f32 %v2624, %v2625
        %v2627 = vrot.slane %v2626, 2
        %v2628 = vadd.f32 %v2626, %v2627
        %v2629 = vrot.slane %v2628, 1
        %v2630 = vadd.f32 %v2628, %v2629
        %v2631 = vadd.f32 %v2587, %v2603
        %v2632 = vrot.slane %v2631, 4
        %v2633 = vadd.f32 %v2631, %v2632
        %v2634 = vrot.slane %v2633, 2
        %v2635 = vadd.f32 %v2633, %v2634
        %v2636 = vrot.slane %v2635, 1
        %v2637 = vadd.f32 %v2635, %v2636
        %v2638 = vadd.f32 %v2588, %v2604
        %v2639 = vrot.slane %v2638, 4
        %v2640 = vadd.f32 %v2638, %v2639
        %v2641 = vrot.slane %v2640, 2
        %v2642 = vadd.f32 %v2640, %v2641
        %v2643 = vrot.slane %v2642, 1
        %v2644 = vadd.f32 %v2642, %v2643
        %v2645 = vadd.f32 %v2589, %v2605
        %v2646 = vrot.slane %v2645, 4
        %v2647 = vadd.f32 %v2645, %v2646
        %v2648 = vrot.slane %v2647, 2
        %v2649 = vadd.f32 %v2647, %v2648
        %v2650 = vrot.slane %v2649, 1
        %v2651 = vadd.f32 %v2649, %v2650
        %v2652 = vadd.f32 %v2590, %v2606
        %v2653 = vrot.slane %v2652, 4
        %v2654 = vadd.f32 %v2652, %v2653
        %v2655 = vrot.slane %v2654, 2
        %v2656 = vadd.f32 %v2654, %v2655
        %v2657 = vrot.slane %v2656, 1
        %v2658 = vadd.f32 %v2656, %v2657
        %v2659 = vadd.f32 %v2591, %v2607
        %v2660 = vrot.slane %v2659, 4
        %v2661 = vadd.f32 %v2659, %v2660
        %v2662 = vrot.slane %v2661, 2
        %v2663 = vadd.f32 %v2661, %v2662
        %v2664 = vrot.slane %v2663, 1
        %v2665 = vadd.f32 %v2663, %v2664
        %v2666 = vadd.f32 %v2592, %v2608
        %v2667 = vrot.slane %v2666, 4
        %v2668 = vadd.f32 %v2666, %v2667
        %v2669 = vrot.slane %v2668, 2
        %v2670 = vadd.f32 %v2668, %v2669
        %v2671 = vrot.slane %v2670, 1
        %v2672 = vadd.f32 %v2670, %v2671
        %v2673 = vadd.f32 %v2593, %v2609
        %v2674 = vrot.slane %v2673, 4
        %v2675 = vadd.f32 %v2673, %v2674
        %v2676 = vrot.slane %v2675, 2
        %v2677 = vadd.f32 %v2675, %v2676
        %v2678 = vrot.slane %v2677, 1
        %v2679 = vadd.f32 %v2677, %v2678
        %v2680 = vadd.f32 %v2594, %v2610
        %v2681 = vrot.slane %v2680, 4
        %v2682 = vadd.f32 %v2680, %v2681
        %v2683 = vrot.slane %v2682, 2
        %v2684 = vadd.f32 %v2682, %v2683
        %v2685 = vrot.slane %v2684, 1
        %v2686 = vadd.f32 %v2684, %v2685
        %v2687 = vadd.f32 %v2595, %v2611
        %v2688 = vrot.slane %v2687, 4
        %v2689 = vadd.f32 %v2687, %v2688
        %v2690 = vrot.slane %v2689, 2
        %v2691 = vadd.f32 %v2689, %v2690
        %v2692 = vrot.slane %v2691, 1
        %v2693 = vadd.f32 %v2691, %v2692
        %v2694 = vadd.f32 %v2596, %v2612
        %v2695 = vrot.slane %v2694, 4
        %v2696 = vadd.f32 %v2694, %v2695
        %v2697 = vrot.slane %v2696, 2
        %v2698 = vadd.f32 %v2696, %v2697
        %v2699 = vrot.slane %v2698, 1
        %v2700 = vadd.f32 %v2698, %v2699
        %v2701 = vadd.f32 %v2597, %v2613
        %v2702 = vrot.slane %v2701, 4
        %v2703 = vadd.f32 %v2701, %v2702
        %v2704 = vrot.slane %v2703, 2
        %v2705 = vadd.f32 %v2703, %v2704
        %v2706 = vrot.slane %v2705, 1
        %v2707 = vadd.f32 %v2705, %v2706
        %v2708 = vadd.f32 %v2598, %v2614
        %v2709 = vrot.slane %v2708, 4
        %v2710 = vadd.f32 %v2708, %v2709
        %v2711 = vrot.slane %v2710, 2
        %v2712 = vadd.f32 %v2710, %v2711
        %v2713 = vrot.slane %v2712, 1
        %v2714 = vadd.f32 %v2712, %v2713
        %v2715 = vadd.f32 %v2599, %v2615
        %v2716 = vrot.slane %v2715, 4
        %v2717 = vadd.f32 %v2715, %v2716
        %v2718 = vrot.slane %v2717, 2
        %v2719 = vadd.f32 %v2717, %v2718
        %v2720 = vrot.slane %v2719, 1
        %v2721 = vadd.f32 %v2719, %v2720
        %v2722 = vadd.f32 %v2600, %v2616
        %v2723 = vrot.slane %v2722, 4
        %v2724 = vadd.f32 %v2722, %v2723
        %v2725 = vrot.slane %v2724, 2
        %v2726 = vadd.f32 %v2724, %v2725
        %v2727 = vrot.slane %v2726, 1
        %v2728 = vadd.f32 %v2726, %v2727
        %v2745 = vcombine.low %v2623, %v2630
        %v2746 = vcombine.low %v2637, %v2644
        %v2747 = vcombine.low %v2651, %v2658
        %v2748 = vcombine.low %v2665, %v2672
        %v2750 = vunpack.c.l.s4 1966171168
        %v2751 = vunpack.c.0.s8 %v2750
        %v2752 = vlaneseq
        %v2753 = vshrl.u32 %v2752, 7
        %v2754 = vsub.s32 %v2751, %v2753
        %v2755 = vrot.slane %v2745, %v2754
        %v2757 = vunpack.c.l.s4 1966171168
        %v2758 = vunpack.c.0.s8 %v2757
        %v2759 = vlaneseq
        %v2760 = vshrl.u32 %v2759, 7
        %v2761 = vsub.s32 %v2758, %v2760
        %v2762 = vrot.slane %v2746, %v2761
        %v2764 = vunpack.c.l.s4 1966171168
        %v2765 = vunpack.c.0.s8 %v2764
        %v2766 = vlaneseq
        %v2767 = vshrl.u32 %v2766, 7
        %v2768 = vsub.s32 %v2765, %v2767
        %v2769 = vrot.slane %v2747, %v2768
        %v2771 = vunpack.c.l.s4 1966171168
        %v2772 = vunpack.c.0.s8 %v2771
        %v2773 = vlaneseq
        %v2774 = vshrl.u32 %v2773, 7
        %v2775 = vsub.s32 %v2772, %v2774
        %v2776 = vrot.slane %v2748, %v2775
        %v2777 = vcombine.low %v2755, %v2762
        %v2778 = vcombine.low %v2769, %v2776
        %v2780 = vunpack.c.l.s4 1966171168
        %v2781 = vunpack.c.0.s8 %v2780
        %v2782 = vlaneseq
        %v2783 = vshrl.u32 %v2782, 7
        %v2784 = vsub.s32 %v2781, %v2783
        %v2785 = vrot.slane %v2777, %v2784
        %v2787 = vunpack.c.l.s4 1966171168
        %v2788 = vunpack.c.0.s8 %v2787
        %v2789 = vlaneseq
        %v2790 = vshrl.u32 %v2789, 7
        %v2791 = vsub.s32 %v2788, %v2790
        %v2792 = vrot.slane %v2778, %v2791
        %v2793 = vcombine.low %v2785, %v2792
        %v2794 = vcombine.low %v2679, %v2686
        %v2795 = vcombine.low %v2693, %v2700
        %v2796 = vcombine.low %v2707, %v2714
        %v2797 = vcombine.low %v2721, %v2728
        %v2799 = vunpack.c.l.s4 1966171168
        %v2800 = vunpack.c.0.s8 %v2799
        %v2801 = vlaneseq
        %v2802 = vshrl.u32 %v2801, 7
        %v2803 = vsub.s32 %v2800, %v2802
        %v2804 = vrot.slane %v2794, %v2803
        %v2806 = vunpack.c.l.s4 1966171168
        %v2807 = vunpack.c.0.s8 %v2806
        %v2808 = vlaneseq
        %v2809 = vshrl.u32 %v2808, 7
        %v2810 = vsub.s32 %v2807, %v2809
        %v2811 = vrot.slane %v2795, %v2810
        %v2813 = vunpack.c.l.s4 1966171168
        %v2814 = vunpack.c.0.s8 %v2813
        %v2815 = vlaneseq
        %v2816 = vshrl.u32 %v2815, 7
        %v2817 = vsub.s32 %v2814, %v2816
        %v2818 = vrot.slane %v2796, %v2817
        %v2820 = vunpack.c.l.s4 1966171168
        %v2821 = vunpack.c.0.s8 %v2820
        %v2822 = vlaneseq
        %v2823 = vshrl.u32 %v2822, 7
        %v2824 = vsub.s32 %v2821, %v2823
        %v2825 = vrot.slane %v2797, %v2824
        %v2826 = vcombine.low %v2804, %v2811
        %v2827 = vcombine.low %v2818, %v2825
        %v2829 = vunpack.c.l.s4 1966171168
        %v2830 = vunpack.c.0.s8 %v2829
        %v2831 = vlaneseq
        %v2832 = vshrl.u32 %v2831, 7
        %v2833 = vsub.s32 %v2830, %v2832
        %v2834 = vrot.slane %v2826, %v2833
        %v2836 = vunpack.c.l.s4 1966171168
        %v2837 = vunpack.c.0.s8 %v2836
        %v2838 = vlaneseq
        %v2839 = vshrl.u32 %v2838, 7
        %v2840 = vsub.s32 %v2837, %v2839
        %v2841 = vrot.slane %v2827, %v2840
        %v2842 = vcombine.low %v2834, %v2841
        %v2845 = vsel %vm238, %v2793, 0.0
        %v2846 = vsel %vm239, %v2842, 0.0
        %2847 = vst [vmem:[%s174] sm:$0xff] %v2845
        %2848 = vst [vmem:[%s174 + $0x8] sm:$0xff] %v2846
        %s2849 = sand.u32 %s75, 1
        %s2850 = scalar_lea.sflag [#allocation4], %s2849
        %s2851 = sand.u32 %s75, 1
        %s2852 = smul.addr %s2851, 16
        %s2853 = scalar_lea.vmem [#allocation7], %s2852
        // Predicated region
        $region37: #{tpu_custom_call.1} parent=27 // pred_check
          %p2854 = pneg %p85
        $region38: #{tpu_custom_call.1} parent=27 // pred_check_branch
          %2856 = sbr.rel (%p2854) target = $region40
        $region39: #{tpu_custom_call.1} parent=27 // pred_region
          %s2857 = smul.u32 16, %s20
          %s2859 = ssub.s32 256, 256
          %2860 = vsyncadd %s2850, %s2859
          %s2861 = smul.addr %s2857, 16
          %s2862 = scalar_lea.hbm %s2, %s2861
          %s2864 = sshll.u32 %s2853, 4
          %s2865 = int_to_ptr.vmem [resolvable:$true] %s2864
          %2867 = dma.vmem_to_hbm [thread:$0]  %s2865, 256, %s2862, %s2850
        $region40: #{tpu_custom_call.1} parent=27 // pred_fallthru
          _
      $region28: #{tpu_custom_call.1} parent=5 // pred_fallthru
        _
      %p2868 = scmp.le.s32.totalorder 2, %s15
      // Predicated region
      $region41: #{tpu_custom_call.1} parent=5 // pred_check
        %p2869 = pneg %p2868
      $region42: #{tpu_custom_call.1} parent=5 // pred_check_branch
        %2871 = sbr.rel (%p2869) target = $region44
      $region43: #{tpu_custom_call.1} parent=5 // pred_region
        %s2872 = ssub.s32 %s15, 2
        // Predicated region
        $region45: #{tpu_custom_call.1} parent=43 // pred_check
          %p2873 = pneg %p91
        $region46: #{tpu_custom_call.1} parent=43 // pred_check_branch
          %2875 = sbr.rel (%p2873) target = $region48
        $region47: #{tpu_custom_call.1} parent=43 // pred_region
          %s2876 = sand.u32 %s76, 1
          %s2877 = scalar_lea.sflag [#allocation4], %s2876
          %s2878 = sand.u32 %s76, 1
          %s2879 = smul.addr %s2878, 16
          %s2880 = scalar_lea.vmem [#allocation7], %s2879
          %2881 = dma.done %s2877, 256
        $region48: #{tpu_custom_call.1} parent=43 // pred_fallthru
          _
      $region44: #{tpu_custom_call.1} parent=5 // pred_fallthru
        _
    $region6: #{tpu_custom_call.1} parent=1 // loop_footer
      %s19 = sadd.s32 1, %s15
    $region7: #{tpu_custom_call.1} parent=1 // loop_footer_branch
      %14 = sbr.rel target = $region3
    $region8: #{tpu_custom_call.1} parent=1 // loop_exit
      _
    %2882 = vsyncpa [#allocation3], 1
    %s2883 = scalar_lea.sflag [#allocation3], 1
    %2884 = vsyncpa %s2883, 1
    %2885 = vsyncpa [#allocation6], 1
    %2886 = vsyncpa [#allocation4], 1
    %s2887 = scalar_lea.sflag [#allocation4], 1
    %2888 = vsyncpa %s2887, 1

</llo_original>
